<compile_context>
chip_gen: v7x
topology: tpu7x:2x2x1
jax: 0.10.0
libtpu: 0.0.40
codegen_flags: <defaults>
</compile_context>

<pallas_src>
import functools
import math

import jax
import jax.numpy as jnp
from jax import lax
from jax.experimental import pallas as pl
from jax.experimental.pallas import tpu as pltpu


# ----------------------------------------------------------------------------
# Pallas render kernel
# ----------------------------------------------------------------------------
def _render_kernel(tri_ref, g_ref, color_ref, out_ref, logt_ref, px_ref, py_ref, *, H):
    # tri_ref   : (NB, NB) mm_dtype strict-lower-triangular constant, tri[j, k] = 1 iff j < k
    # g_ref     : (8,  NB) f32 rows = [mean_x, mean_y, -.5*invA, -.5*(invB+invC), -.5*invD,
    #                                  opacity, 0, 0]   (depth sorted, zero padded)
    # color_ref : (NB, 8)  mm_dtype per-gaussian [r, g, b, 0, 0, 0, 0, 0]
    # out_ref   : (TP, 8)  f32  [r, g, b, T_last, 0, 0, 0, 0]  (resident across gid)
    # logt_ref  : (TP, 1)  f32  scratch: carried log-transmittance across gaussian blocks
    # px_ref    : (TP, 1)  f32  scratch: pixel x coordinate (computed once per pixel tile)
    # py_ref    : (TP, 1)  f32  scratch: pixel y coordinate
    pid = pl.program_id(0)            # pixel tile     (outer, "parallel")
    gid = pl.program_id(1)            # gaussian block (inner, "arbitrary")
    TP = out_ref.shape[0]

    @pl.when(gid == 0)
    def _init():
        logt_ref[...] = jnp.zeros_like(logt_ref)
        out_ref[...] = jnp.zeros_like(out_ref)
        # Hoisted per-tile coordinate math (depends only on pid, not on gid).
        l = lax.broadcasted_iota(jnp.int32, (TP, 1), 0)
        p = (l + pid * TP).astype(jnp.float32)        # flat index, exact in f32 (< 2^24)
        px = jnp.floor(p / jnp.float32(H))            # x = p // H
        px_ref[...] = px
        py_ref[...] = p - px * jnp.float32(H)         # y = p %  H

    px = px_ref[...]                                  # (TP, 1)
    py = py_ref[...]

    mx = g_ref[0:1, :]                                # (1, NB)
    my = g_ref[1:2, :]
    ia = g_ref[2:3, :]                                # already scaled by -0.5 on host
    ibc = g_ref[3:4, :]
    idd = g_ref[4:5, :]
    op = g_ref[5:6, :]

    # dis1 = means2D - point; quadratic factored to cut f32 VPU ops.
    dx = mx - px                                      # (TP, NB)
    dy = my - py
    power = dx * (ia * dx + ibc * dy) + idd * (dy * dy)
    power = jnp.minimum(power, 0.0)                   # clamp(max=0)
    alpha = jnp.minimum(op * jnp.exp(power), 0.99)    # clamp(max=0.99)
    alpha = jnp.where(alpha < (1.0 / 255.0), 0.0, alpha)

    # Within-block exclusive prefix sum of log(1 - alpha) on the MXU (f32 accumulate);
    # the cross-block carry stays exact f32 in logt_ref.
    logs = jnp.log(1.0 - alpha)                       # 1 - alpha >= 0.01 -> safe
    cum_excl = jnp.dot(logs.astype(tri_ref.dtype), tri_ref[...],
                       preferred_element_type=jnp.float32)
    tran = jnp.exp(logt_ref[...] + cum_excl)          # exclusive transmittance (TP, NB)
    tran = jnp.where(tran < 0.001, 0.0, tran)
    weight = (alpha * tran).astype(color_ref.dtype)
    out_ref[...] += jnp.dot(weight, color_ref[...],
                            preferred_element_type=jnp.float32)
    logt_ref[...] += jnp.sum(logs, axis=1, keepdims=True)   # exact f32 carry update

    @pl.when(gid == pl.num_programs(1) - 1)
    def _finalize():
        # T_last is the carried transmittance after the last gaussian block -- free.
        t_last = jnp.exp(logt_ref[...])
        t_last = jnp.where(t_last < 0.001, 0.0, t_last)
        lane = lax.broadcasted_iota(jnp.int32, (TP, 8), 1)
        out_ref[...] += jnp.where(lane == 3, t_last, 0.0)


def _round_up(x, m):
    return ((x + m - 1) // m) * m


def _default_mm_dtype():
    # bf16 matmul operands on v5e (bf16 MXU throughput is the tight resource there);
    # f32 on v6e/v7x where the MXU has slack and f32 removes prefix-sum quantization.
    try:
        kind = jax.devices()[0].device_kind.lower()
        if ("v5 lite" in kind) or ("v5e" in kind) or ("v5litepod" in kind):
            return jnp.bfloat16
    except Exception:
        pass
    return jnp.float32


def pallas_render(means2d, inv2d, color, opacity, *, W, H, tp=1024, nb=256,
                  mm_dtype=None):
    """Composite depth-sorted 2D Gaussians over a W*H pixel grid.

    means2d: (N,2), inv2d: (N,2,2), color: (N,3), opacity: (N,) -- already depth sorted.
    Returns (P, 4) f32 with columns [r, g, b, T_last], flat pixel index p = x*H + y.
    """
    P = W * H
    N = means2d.shape[0]
    if mm_dtype is None:
        mm_dtype = _default_mm_dtype()

    # Lane-aligned block sizes.  NB=256 matches the 2x256^2 MXU on v6e/v7x (and is two
    # 128-wide K passes on v5e); TP defaults to 1024 to amortize per-grid-step overhead.
    NB = min(nb, _round_up(N, 128))
    TP = min(tp, _round_up(P, 128))
    # v7x megacore: keep n_pix >= 2 so the "parallel" pixel axis shards across both TCs.
    if TP >= 256 and _round_up(P, TP) == TP:
        TP = _round_up(TP // 2, 128)
    Npad = _round_up(N, NB)          # pad gaussians (zero opacity -> no contribution)
    Ppad = _round_up(P, TP)          # pad pixels (sliced off in the wrapper)

    zeros = jnp.zeros((N,), jnp.float32)
    # Fold the -0.5 of the quadratic form into the inverse-covariance rows (O(N) host-side
    # one-off; the saved work inside the kernel is O(P*N)).
    ia = -0.5 * inv2d[:, 0, 0]
    ibc = -0.5 * (inv2d[:, 0, 1] + inv2d[:, 1, 0])
    idd = -0.5 * inv2d[:, 1, 1]
    g = jnp.stack(
        [means2d[:, 0], means2d[:, 1], ia, ibc, idd,
         opacity.reshape(-1), zeros, zeros],
        axis=0).astype(jnp.float32)                            # (8, N)
    g = jnp.pad(g, ((0, 0), (0, Npad - N)))                    # zero-opacity padding
    color8 = jnp.pad(color.astype(jnp.float32),
                     ((0, Npad - N), (0, 5))).astype(mm_dtype)  # (Npad, 8)

    r = jnp.arange(NB)
    tri = (r[:, None] < r[None, :]).astype(mm_dtype)           # strict lower tri, exact 0/1

    n_pix = Ppad // TP
    n_gb = Npad // NB
    mm_bytes = jnp.dtype(mm_dtype).itemsize
    cost = pl.CostEstimate(
        flops=int(2 * Ppad * Npad * (NB + 8) + 10 * Ppad * Npad),
        transcendentals=int(3 * Ppad * Npad + Ppad),
        bytes_accessed=int(n_pix * (g.size * 4 + color8.size * mm_bytes)
                           + tri.size * mm_bytes + Ppad * 8 * 4))

    kernel = functools.partial(_render_kernel, H=H)
    out = pl.pallas_call(
        kernel,
        out_shape=jax.ShapeDtypeStruct((Ppad, 8), jnp.float32),
        grid_spec=pltpu.PrefetchScalarGridSpec(
            num_scalar_prefetch=0,
            grid=(n_pix, n_gb),                                # pixel outer, gaussian inner
            in_specs=[
                pl.BlockSpec((NB, NB), lambda i, j: (0, 0)),   # constant block: DMA'd once
                pl.BlockSpec((8, NB), lambda i, j: (0, j)),
                pl.BlockSpec((NB, 8), lambda i, j: (j, 0)),
            ],
            out_specs=pl.BlockSpec((TP, 8), lambda i, j: (i, 0)),
            scratch_shapes=[pltpu.VMEM((TP, 1), jnp.float32),   # carried log-T
                            pltpu.VMEM((TP, 1), jnp.float32),   # pixel x (per-tile)
                            pltpu.VMEM((TP, 1), jnp.float32)],  # pixel y (per-tile)
        ),
        compiler_params=pltpu.CompilerParams(
            dimension_semantics=("parallel", "arbitrary"),
            vmem_limit_bytes=40 * 1024 * 1024),
        cost_estimate=cost,
    )(tri, g, color8)
    return out[:P, :4]


# ----------------------------------------------------------------------------
# Plain-JAX glue reproducing the torch-splatting helper functions
# ----------------------------------------------------------------------------
SH_C0 = 0.28209479177387814
SH_C1 = 0.4886025119029199
SH_C2 = (1.0925484305920792, -1.0925484305920792, 0.31539156525252005,
         -1.0925484305920792, 0.5462742152960396)
SH_C3 = (-0.5900435899266435, 2.890611442640554, -0.4570457994644658,
         0.3731763325901154, -0.4570457994644658, 1.445305721320277,
         -0.5900435899266435)


def homogeneous(points):
    return jnp.concatenate([points, jnp.ones_like(points[..., :1])], axis=-1)


def projection_ndc(points, viewmatrix, projmatrix):
    points_o = homogeneous(points)
    points_h = points_o @ viewmatrix @ projmatrix
    p_w = 1.0 / (points_h[..., -1:] + 1e-6)
    p_proj = points_h * p_w
    p_view = points_o @ viewmatrix
    return p_proj, p_view


def eval_sh(deg, sh, dirs):
    # sh: (N, 3, (deg+1)^2), dirs: (N, 3)
    result = SH_C0 * sh[..., 0]
    if deg > 0:
        x, y, z = dirs[..., 0:1], dirs[..., 1:2], dirs[..., 2:3]
        result = result - SH_C1 * y * sh[..., 1] + SH_C1 * z * sh[..., 2] \
                 - SH_C1 * x * sh[..., 3]
        if deg > 1:
            xx, yy, zz = x * x, y * y, z * z
            xy, yz, xz = x * y, y * z, x * z
            result = (result
                      + SH_C2[0] * xy * sh[..., 4]
                      + SH_C2[1] * yz * sh[..., 5]
                      + SH_C2[2] * (2.0 * zz - xx - yy) * sh[..., 6]
                      + SH_C2[3] * xz * sh[..., 7]
                      + SH_C2[4] * (xx - yy) * sh[..., 8])
            if deg > 2:
                result = (result
                          + SH_C3[0] * y * (3 * xx - yy) * sh[..., 9]
                          + SH_C3[1] * xy * z * sh[..., 10]
                          + SH_C3[2] * y * (4 * zz - xx - yy) * sh[..., 11]
                          + SH_C3[3] * z * (2 * zz - 3 * xx - 3 * yy) * sh[..., 12]
                          + SH_C3[4] * x * (4 * zz - xx - yy) * sh[..., 13]
                          + SH_C3[5] * z * (xx - yy) * sh[..., 14]
                          + SH_C3[6] * x * (xx - 3 * yy) * sh[..., 15])
    return result


def build_color(means3D, sh_degree, shs, camera):
    rays_d = means3D - camera.camera_center
    rays_d = rays_d / jnp.linalg.norm(rays_d, axis=-1, keepdims=True)
    color = eval_sh(sh_degree, jnp.transpose(shs, (0, 2, 1)), rays_d)
    return jnp.clip(color + 0.5, 0.0, None)


def gen_scaling(scales):
    return jax.vmap(jnp.diag)(scales)


def gen_rotation(r):
    q = r / jnp.linalg.norm(r, axis=-1, keepdims=True)
    w, x, y, z = q[:, 0], q[:, 1], q[:, 2], q[:, 3]
    R = jnp.stack([
        jnp.stack([1 - 2 * (y * y + z * z), 2 * (x * y - w * z), 2 * (x * z + w * y)], -1),
        jnp.stack([2 * (x * y + w * z), 1 - 2 * (x * x + z * z), 2 * (y * z - w * x)], -1),
        jnp.stack([2 * (x * z - w * y), 2 * (y * z + w * x), 1 - 2 * (x * x + y * y)], -1),
    ], axis=1)
    return R


def get_covariance_3d(R, S):
    L = R @ S
    return L @ jnp.transpose(L, (0, 2, 1))


def get_covariance_2d(mean3d, cov3d, w2cam, focal_x, focal_y, trans):
    # TODO(synk): reference helper also clamps tx/tz, ty/tz to 1.3*tan(fov) and culls
    # gaussians behind the camera; omitted here (helper not included in the spec).
    del trans
    t = mean3d @ w2cam[:3, :3] + w2cam[3:4, :3]
    tx, ty, tz = t[:, 0], t[:, 1], t[:, 2]
    zeros = jnp.zeros_like(tz)
    J = jnp.stack([
        jnp.stack([focal_x / tz, zeros, -(focal_x * tx) / (tz * tz)], -1),
        jnp.stack([zeros, focal_y / tz, -(focal_y * ty) / (tz * tz)], -1),
        jnp.stack([zeros, zeros, zeros], -1),
    ], axis=1)                                            # (N, 3, 3)
    Wm = jnp.broadcast_to(w2cam[:3, :3].T, (mean3d.shape[0], 3, 3))
    cov = J @ Wm @ cov3d @ jnp.transpose(Wm, (0, 2, 1)) @ jnp.transpose(J, (0, 2, 1))
    return cov[:, :2, :2] + 0.3 * jnp.eye(2, dtype=cov.dtype)   # low-pass filter


# ----------------------------------------------------------------------------
# Renderer / camera / point-cloud stand-ins
# ----------------------------------------------------------------------------
class Camera:
    def __init__(self, width, height, fov_deg=60.0, znear=0.01, zfar=100.0, cam_z=4.0):
        self.image_width = width
        self.image_height = height
        tanf = math.tan(math.radians(fov_deg) / 2.0)
        self.focal_x = width / (2.0 * tanf)
        self.focal_y = height / (2.0 * tanf)
        # row-vector convention: p_cam = p_h @ world_view_transform
        self.world_view_transform = jnp.eye(4, dtype=jnp.float32).at[3, 2].set(cam_z)
        self.camera_center = jnp.array([0.0, 0.0, -cam_z], jnp.float32)
        P = jnp.zeros((4, 4), jnp.float32)
        P = P.at[0, 0].set(1.0 / tanf)
        P = P.at[1, 1].set(1.0 / tanf)
        P = P.at[2, 2].set(zfar / (zfar - znear))
        P = P.at[2, 3].set(1.0)
        P = P.at[3, 2].set(-(zfar * znear) / (zfar - znear))
        self.projection_matrix = P
        self.trans = jnp.zeros((3,), jnp.float32)


class PointCloud:
    def __init__(self, xyz, opacity, scaling, rotation, features):
        self._xyz, self._opacity = xyz, opacity
        self._scaling, self._rotation, self._features = scaling, rotation, features

    @property
    def get_xyz(self): return self._xyz
    @property
    def get_opacity(self): return self._opacity
    @property
    def get_scaling(self): return self._scaling
    @property
    def get_rotation(self): return self._rotation
    @property
    def get_features(self): return self._features


class GaussRendererPallas:
    def __init__(self, active_sh_degree=3, white_bkgd=True, width=256, height=256,
                 pixel_tile=1024, gauss_block=256):
        self.active_sh_degree = active_sh_degree
        self.W, self.H = width, height
        self.pixel_tile = pixel_tile
        self.gauss_block = gauss_block
        self.bg = jnp.zeros((width, height, 3), jnp.float32)

    def _prepare(self, camera, pc):
        means3D = pc.get_xyz
        opacity = pc.get_opacity
        scales = pc.get_scaling
        rotations = pc.get_rotation
        shs = pc.get_features

        mean_ndc, mean_view = projection_ndc(
            means3D, camera.world_view_transform, camera.projection_matrix)
        depths = mean_view[:, 2]
        color = build_color(means3D, 3, shs, camera)
        S = gen_scaling(scales)
        R = gen_rotation(rotations)
        cov3d = get_covariance_3d(R, S)
        cov2d = get_covariance_2d(means3D, cov3d, camera.world_view_transform,
                                  camera.focal_x, camera.focal_y, camera.trans)
        mean_coord_x = ((mean_ndc[..., 0] + 1) * camera.image_width - 1.0) * 0.5
        mean_coord_y = ((mean_ndc[..., 1] + 1) * camera.image_height - 1.0) * 0.5
        means2D = jnp.stack([mean_coord_x, mean_coord_y], axis=-1)
        return means2D, depths, cov2d, color, opacity

    def render(self, means2D, depths, cov2D, color, opacity):
        idx = jnp.argsort(depths)
        means2D, cov2D = means2D[idx], cov2D[idx]
        color, opacity = color[idx], opacity[idx]
        a, b = cov2D[:, 0, 0], cov2D[:, 0, 1]
        c, d = cov2D[:, 1, 0], cov2D[:, 1, 1]
        det = a * d - b * c
        inv = jnp.stack([jnp.stack([d, -b], -1),
                         jnp.stack([-c, a], -1)], axis=1) / det[:, None, None]
        out = pallas_render(means2D, inv, color, opacity.reshape(-1),
                            W=self.W, H=self.H,
                            tp=self.pixel_tile, nb=self.gauss_block)
        rgb = out[:, :3].reshape(self.W, self.H, 3)
        t_last = out[:, 3].reshape(self.W, self.H, 1)
        img = rgb + self.bg * t_last
        return {"render": jnp.transpose(img, (1, 0, 2))}

    def __call__(self, camera, pc):
        means2D, depths, cov2d, color, opacity = self._prepare(camera, pc)
        return self.render(means2D=means2D, depths=depths, cov2D=cov2d,
                           color=color, opacity=opacity)


# ----------------------------------------------------------------------------
# Dense pure-JAX reference of render() (mirrors the torch math) for sanity check
# ----------------------------------------------------------------------------
def _reference_render(means2D, depths, cov2D, color, opacity, W, H, bg):
    idx = jnp.argsort(depths)
    means2D, cov2D = means2D[idx], cov2D[idx]
    color, opacity = color[idx], opacity[idx]
    inv = jnp.linalg.inv(cov2D)
    xs, ys = jnp.meshgrid(jnp.arange(W), jnp.arange(H), indexing="ij")
    point = jnp.stack([xs, ys], -1).reshape(-1, 1, 2).astype(jnp.float32)
    dis = means2D[None, :, :] - point                           # (P, N, 2)
    power = -0.5 * jnp.einsum("pni,nij,pnj->pn", dis, inv, dis)
    power = jnp.minimum(power, 0.0)
    alpha = jnp.minimum(opacity.reshape(1, -1) * jnp.exp(power), 0.99)
    alpha = jnp.where(alpha < 1.0 / 255.0, 0.0, alpha)
    tran = jnp.concatenate([jnp.ones((W * H, 1), jnp.float32), 1.0 - alpha], axis=-1)
    tran = jnp.cumprod(tran, axis=1)
    tran = jnp.where(tran < 0.001, 0.0, tran)
    weight = alpha * tran[:, :-1]
    out = (weight @ color).reshape(W, H, 3) + bg * tran[:, -1].reshape(W, H, 1)
    return jnp.transpose(out, (1, 0, 2))


# ----------------------------------------------------------------------------
if __name__ == "__main__":
    key = jax.random.PRNGKey(0)
    W = H = 16          # small image
    N = 64              # small gaussian count
    k1, k2, k3, k4, k5 = jax.random.split(key, 5)

    xyz = jax.random.uniform(k1, (N, 3), minval=-0.8, maxval=0.8).astype(jnp.float32)
    opacity = jax.nn.sigmoid(jax.random.normal(k2, (N, 1))).astype(jnp.float32)
    scaling = (jnp.exp(0.3 * jax.random.normal(k3, (N, 3))) * 0.2).astype(jnp.float32)
    rotation = jax.random.normal(k4, (N, 4)).astype(jnp.float32)
    features = (0.3 * jax.random.normal(k5, (N, 16, 3))).astype(jnp.float32)

    pc = PointCloud(xyz, opacity, scaling, rotation, features)
    camera = Camera(W, H)
    renderer = GaussRendererPallas(active_sh_degree=3, width=W, height=H)

    rets = renderer(camera, pc)
    img = jax.block_until_ready(rets["render"])

    assert img.shape == (H, W, 3), img.shape
    assert bool(jnp.isfinite(img).all())

    # sanity check vs. a dense f32 reference (bf16 operands on v5e -> loose tolerance)
    means2D, depths, cov2d, color, opac = renderer._prepare(camera, pc)
    ref = _reference_render(means2D, depths, cov2d, color, opac, W, H, renderer.bg)
    max_err = float(jnp.max(jnp.abs(img - ref)))
    assert max_err < 1e-1, max_err

    print("KERNEL_OK")
</pallas_src>

<mosaic_0001>
module attributes {stable_mosaic.version = 11 : i64} {
  func.func @_render_kernel(%arg0: i32, %arg1: i32, %arg2: memref<128x128xf32, #tpu.memory_space<vmem>>, %arg3: memref<8x128xf32, #tpu.memory_space<vmem>>, %arg4: memref<128x8xf32, #tpu.memory_space<vmem>>, %arg5: memref<128x8xf32, #tpu.memory_space<vmem>>, %arg6: memref<128x1xf32, #tpu.memory_space<vmem>>, %arg7: memref<128x1xf32, #tpu.memory_space<vmem>>, %arg8: memref<128x1xf32, #tpu.memory_space<vmem>>) attributes {dimension_semantics = [#tpu.dimension_semantics<parallel>, #tpu.dimension_semantics<arbitrary>], iteration_bounds = array<i64: 2, 1>, scalar_prefetch = 0 : i64, scratch_operands = 3 : i64, tpu.core_type = #tpu.core_type<tc>, window_params = [{pipeline_mode = #tpu.pipeline_mode<synchronous>, transform_indices = @transform_0, window_bounds = array<i64: 128, 128>}, {transform_indices = @transform_1, window_bounds = array<i64: 8, 128>}, {transform_indices = @transform_2, window_bounds = array<i64: 128, 8>}, {transform_indices = @transform_3, window_bounds = array<i64: 128, 8>}]} {
    %c0_i32 = arith.constant 0 : i32
    %0 = arith.cmpi eq, %arg1, %c0_i32 : i32
    %1 = arith.extui %0 : i1 to i32
    %c0_i32_0 = arith.constant 0 : i32
    %2 = arith.cmpi ne, %1, %c0_i32_0 : i32
    scf.if %2 {
      %cst_36 = arith.constant 0.000000e+00 : f32
      %65 = vector.broadcast %cst_36 : f32 to vector<128x1xf32>
      %c0_37 = arith.constant 0 : index
      %c0_38 = arith.constant 0 : index
      %66 = vector.load %arg6[%c0_37, %c0_38] : memref<128x1xf32, #tpu.memory_space<vmem>>, vector<128x1xf32>
      tpu.vector_store %arg6[%c0_37, %c0_38], %65 {strides = array<i32>} : memref<128x1xf32, #tpu.memory_space<vmem>>, vector<128x1xf32>,
      %cst_39 = arith.constant 0.000000e+00 : f32
      %67 = vector.broadcast %cst_39 : f32 to vector<128x8xf32>
      %c0_40 = arith.constant 0 : index
      %c0_41 = arith.constant 0 : index
      %68 = vector.load %arg5[%c0_40, %c0_41] : memref<128x8xf32, #tpu.memory_space<vmem>>, vector<128x8xf32>
      tpu.vector_store %arg5[%c0_40, %c0_41], %67 {strides = array<i32>} : memref<128x8xf32, #tpu.memory_space<vmem>>, vector<128x8xf32>,
      %69 = tpu.iota {dimensions = array<i32: 0>} : vector<128x1xi32>
      %c128_i32 = arith.constant 128 : i32
      %70 = arith.muli %arg0, %c128_i32 : i32
      %71 = vector.broadcast %70 : i32 to vector<128x1xi32>
      %72 = arith.addi %69, %71 : vector<128x1xi32>
      %73 = arith.sitofp %72 : vector<128x1xi32> to vector<128x1xf32>
      %cst_42 = arith.constant 1.600000e+01 : f32
      %74 = vector.broadcast %cst_42 : f32 to vector<128x1xf32>
      %75 = arith.divf %73, %74 : vector<128x1xf32>
      %76 = math.floor %75 : vector<128x1xf32>
      %c0_43 = arith.constant 0 : index
      %c0_44 = arith.constant 0 : index
      %77 = vector.load %arg7[%c0_43, %c0_44] : memref<128x1xf32, #tpu.memory_space<vmem>>, vector<128x1xf32>
      tpu.vector_store %arg7[%c0_43, %c0_44], %76 {strides = array<i32>} : memref<128x1xf32, #tpu.memory_space<vmem>>, vector<128x1xf32>,
      %cst_45 = arith.constant 1.600000e+01 : f32
      %78 = vector.broadcast %cst_45 : f32 to vector<128x1xf32>
      %79 = arith.mulf %76, %78 : vector<128x1xf32>
      %80 = arith.subf %73, %79 : vector<128x1xf32>
      %c0_46 = arith.constant 0 : index
      %c0_47 = arith.constant 0 : index
      %81 = vector.load %arg8[%c0_46, %c0_47] : memref<128x1xf32, #tpu.memory_space<vmem>>, vector<128x1xf32>
      tpu.vector_store %arg8[%c0_46, %c0_47], %80 {strides = array<i32>} : memref<128x1xf32, #tpu.memory_space<vmem>>, vector<128x1xf32>,
    } else {
    }
    %c0 = arith.constant 0 : index
    %c0_1 = arith.constant 0 : index
    %3 = vector.load %arg7[%c0, %c0_1] : memref<128x1xf32, #tpu.memory_space<vmem>>, vector<128x1xf32>
    %c0_2 = arith.constant 0 : index
    %c0_3 = arith.constant 0 : index
    %4 = vector.load %arg8[%c0_2, %c0_3] : memref<128x1xf32, #tpu.memory_space<vmem>>, vector<128x1xf32>
    %c0_4 = arith.constant 0 : index
    %c0_5 = arith.constant 0 : index
    %5 = vector.load %arg3[%c0_4, %c0_5] : memref<8x128xf32, #tpu.memory_space<vmem>>, vector<1x128xf32>
    %c1 = arith.constant 1 : index
    %c0_6 = arith.constant 0 : index
    %6 = vector.load %arg3[%c1, %c0_6] : memref<8x128xf32, #tpu.memory_space<vmem>>, vector<1x128xf32>
    %c2 = arith.constant 2 : index
    %c0_7 = arith.constant 0 : index
    %7 = vector.load %arg3[%c2, %c0_7] : memref<8x128xf32, #tpu.memory_space<vmem>>, vector<1x128xf32>
    %c3 = arith.constant 3 : index
    %c0_8 = arith.constant 0 : index
    %8 = vector.load %arg3[%c3, %c0_8] : memref<8x128xf32, #tpu.memory_space<vmem>>, vector<1x128xf32>
    %c4 = arith.constant 4 : index
    %c0_9 = arith.constant 0 : index
    %9 = vector.load %arg3[%c4, %c0_9] : memref<8x128xf32, #tpu.memory_space<vmem>>, vector<1x128xf32>
    %c5 = arith.constant 5 : index
    %c0_10 = arith.constant 0 : index
    %10 = vector.load %arg3[%c5, %c0_10] : memref<8x128xf32, #tpu.memory_space<vmem>>, vector<1x128xf32>
    %11 = vector.broadcast %5 : vector<1x128xf32> to vector<128x128xf32>
    %12 = vector.broadcast %3 : vector<128x1xf32> to vector<128x128xf32>
    %13 = arith.subf %11, %12 : vector<128x128xf32>
    %14 = vector.broadcast %6 : vector<1x128xf32> to vector<128x128xf32>
    %15 = vector.broadcast %4 : vector<128x1xf32> to vector<128x128xf32>
    %16 = arith.subf %14, %15 : vector<128x128xf32>
    %17 = vector.broadcast %7 : vector<1x128xf32> to vector<128x128xf32>
    %18 = arith.mulf %17, %13 : vector<128x128xf32>
    %19 = vector.broadcast %8 : vector<1x128xf32> to vector<128x128xf32>
    %20 = arith.mulf %19, %16 : vector<128x128xf32>
    %21 = arith.addf %18, %20 : vector<128x128xf32>
    %22 = arith.mulf %13, %21 : vector<128x128xf32>
    %23 = arith.mulf %16, %16 : vector<128x128xf32>
    %24 = vector.broadcast %9 : vector<1x128xf32> to vector<128x128xf32>
    %25 = arith.mulf %24, %23 : vector<128x128xf32>
    %26 = arith.addf %22, %25 : vector<128x128xf32>
    %cst = arith.constant 0.000000e+00 : f32
    %27 = vector.broadcast %cst : f32 to vector<128x128xf32>
    %28 = arith.minimumf %26, %27 : vector<128x128xf32>
    %29 = math.exp %28 : vector<128x128xf32>
    %30 = vector.broadcast %10 : vector<1x128xf32> to vector<128x128xf32>
    %31 = arith.mulf %30, %29 : vector<128x128xf32>
    %cst_11 = arith.constant 9.900000e-01 : f32
    %32 = vector.broadcast %cst_11 : f32 to vector<128x128xf32>
    %33 = arith.minimumf %31, %32 : vector<128x128xf32>
    %cst_12 = arith.constant 0.00392156886 : f32
    %34 = vector.broadcast %cst_12 : f32 to vector<128x128xf32>
    %35 = arith.cmpf olt, %33, %34 : vector<128x128xf32>
    %cst_13 = arith.constant 0.000000e+00 : f32
    %36 = vector.broadcast %cst_13 : f32 to vector<128x128xf32>
    %37 = arith.select %35, %36, %33 : vector<128x128xi1>, vector<128x128xf32>
    %cst_14 = arith.constant 1.000000e+00 : f32
    %38 = vector.broadcast %cst_14 : f32 to vector<128x128xf32>
    %39 = arith.subf %38, %37 : vector<128x128xf32>
    %40 = math.log %39 : vector<128x128xf32>
    %c0_15 = arith.constant 0 : index
    %c0_16 = arith.constant 0 : index
    %41 = vector.load %arg2[%c0_15, %c0_16] : memref<128x128xf32, #tpu.memory_space<vmem>>, vector<128x128xf32>
    %cst_17 = arith.constant dense<0.000000e+00> : vector<128x128xf32>
    %42 = tpu.matmul %40, %41, %cst_17 {dimension_numbers = #tpu.dot_dimension_numbers<[1], [0], [0], [1], [0, 0, 1, 1], [], []>} : vector<128x128xf32>, vector<128x128xf32>, vector<128x128xf32> -> vector<128x128xf32>
    %c0_18 = arith.constant 0 : index
    %c0_19 = arith.constant 0 : index
    %43 = vector.load %arg6[%c0_18, %c0_19] : memref<128x1xf32, #tpu.memory_space<vmem>>, vector<128x1xf32>
    %44 = vector.broadcast %43 : vector<128x1xf32> to vector<128x128xf32>
    %45 = arith.addf %44, %42 : vector<128x128xf32>
    %46 = math.exp %45 : vector<128x128xf32>
    %cst_20 = arith.constant 1.000000e-03 : f32
    %47 = vector.broadcast %cst_20 : f32 to vector<128x128xf32>
    %48 = arith.cmpf olt, %46, %47 : vector<128x128xf32>
    %cst_21 = arith.constant 0.000000e+00 : f32
    %49 = vector.broadcast %cst_21 : f32 to vector<128x128xf32>
    %50 = arith.select %48, %49, %46 : vector<128x128xi1>, vector<128x128xf32>
    %51 = arith.mulf %37, %50 : vector<128x128xf32>
    %c0_22 = arith.constant 0 : index
    %c0_23 = arith.constant 0 : index
    %52 = vector.load %arg5[%c0_22, %c0_23] : memref<128x8xf32, #tpu.memory_space<vmem>>, vector<128x8xf32>
    %c0_24 = arith.constant 0 : index
    %c0_25 = arith.constant 0 : index
    %53 = vector.load %arg4[%c0_24, %c0_25] : memref<128x8xf32, #tpu.memory_space<vmem>>, vector<128x8xf32>
    %cst_26 = arith.constant dense<0.000000e+00> : vector<128x8xf32>
    %54 = tpu.matmul %51, %53, %cst_26 {dimension_numbers = #tpu.dot_dimension_numbers<[1], [0], [0], [1], [0, 0, 1, 1], [], []>} : vector<128x128xf32>, vector<128x8xf32>, vector<128x8xf32> -> vector<128x8xf32>
    %55 = arith.addf %52, %54 : vector<128x8xf32>
    %c0_27 = arith.constant 0 : index
    %c0_28 = arith.constant 0 : index
    %56 = vector.load %arg5[%c0_27, %c0_28] : memref<128x8xf32, #tpu.memory_space<vmem>>, vector<128x8xf32>
    tpu.vector_store %arg5[%c0_27, %c0_28], %55 {strides = array<i32>} : memref<128x8xf32, #tpu.memory_space<vmem>>, vector<128x8xf32>,
    %c0_29 = arith.constant 0 : index
    %c0_30 = arith.constant 0 : index
    %57 = vector.load %arg6[%c0_29, %c0_30] : memref<128x1xf32, #tpu.memory_space<vmem>>, vector<128x1xf32>
    %cst_31 = arith.constant dense<0.000000e+00> : vector<128xf32>
    %58 = vector.multi_reduction <add>, %40, %cst_31 [1] : vector<128x128xf32> to vector<128xf32>
    %59 = vector.shape_cast %58 : vector<128xf32> to vector<128x1xf32>
    %60 = arith.addf %57, %59 : vector<128x1xf32>
    %c0_32 = arith.constant 0 : index
    %c0_33 = arith.constant 0 : index
    %61 = vector.load %arg6[%c0_32, %c0_33] : memref<128x1xf32, #tpu.memory_space<vmem>>, vector<128x1xf32>
    tpu.vector_store %arg6[%c0_32, %c0_33], %60 {strides = array<i32>} : memref<128x1xf32, #tpu.memory_space<vmem>>, vector<128x1xf32>,
    %c0_i32_34 = arith.constant 0 : i32
    %62 = arith.cmpi eq, %arg1, %c0_i32_34 : i32
    %63 = arith.extui %62 : i1 to i32
    %c0_i32_35 = arith.constant 0 : i32
    %64 = arith.cmpi ne, %63, %c0_i32_35 : i32
    scf.if %64 {
      %c0_36 = arith.constant 0 : index
      %c0_37 = arith.constant 0 : index
      %65 = vector.load %arg6[%c0_36, %c0_37] : memref<128x1xf32, #tpu.memory_space<vmem>>, vector<128x1xf32>
      %66 = math.exp %65 : vector<128x1xf32>
      %cst_38 = arith.constant 1.000000e-03 : f32
      %67 = vector.broadcast %cst_38 : f32 to vector<128x1xf32>
      %68 = arith.cmpf olt, %66, %67 : vector<128x1xf32>
      %cst_39 = arith.constant 0.000000e+00 : f32
      %69 = vector.broadcast %cst_39 : f32 to vector<128x1xf32>
      %70 = arith.select %68, %69, %66 : vector<128x1xi1>, vector<128x1xf32>
      %71 = tpu.iota {dimensions = array<i32: 1>} : vector<128x8xi32>
      %c0_40 = arith.constant 0 : index
      %c0_41 = arith.constant 0 : index
      %72 = vector.load %arg5[%c0_40, %c0_41] : memref<128x8xf32, #tpu.memory_space<vmem>>, vector<128x8xf32>
      %c3_i32 = arith.constant 3 : i32
      %73 = vector.broadcast %c3_i32 : i32 to vector<128x8xi32>
      %74 = arith.cmpi eq, %71, %73 : vector<128x8xi32>
      %cst_42 = arith.constant 0.000000e+00 : f32
      %75 = vector.shape_cast %70 : vector<128x1xf32> to vector<128x1xf32>
      %76 = vector.broadcast %75 : vector<128x1xf32> to vector<128x8xf32>
      %77 = vector.broadcast %cst_42 : f32 to vector<128x8xf32>
      %78 = arith.select %74, %76, %77 : vector<128x8xi1>, vector<128x8xf32>
      %79 = arith.addf %72, %78 : vector<128x8xf32>
      %c0_43 = arith.constant 0 : index
      %c0_44 = arith.constant 0 : index
      %80 = vector.load %arg5[%c0_43, %c0_44] : memref<128x8xf32, #tpu.memory_space<vmem>>, vector<128x8xf32>
      tpu.vector_store %arg5[%c0_43, %c0_44], %79 {strides = array<i32>} : memref<128x8xf32, #tpu.memory_space<vmem>>, vector<128x8xf32>,
    } else {
    }
    return
  }
  func.func @transform_0(%arg0: i32, %arg1: i32) -> (i32, i32) {
    %c0_i32 = arith.constant 0 : i32
    %c0_i32_0 = arith.constant 0 : i32
    %c0_i32_1 = arith.constant 0 : i32
    return %c0_i32, %c0_i32_0 : i32, i32
  }
  func.func @transform_1(%arg0: i32, %arg1: i32) -> (i32, i32) {
    %c0_i32 = arith.constant 0 : i32
    %c0_i32_0 = arith.constant 0 : i32
    return %c0_i32, %arg1 : i32, i32
  }
  func.func @transform_2(%arg0: i32, %arg1: i32) -> (i32, i32) {
    %c0_i32 = arith.constant 0 : i32
    %c0_i32_0 = arith.constant 0 : i32
    return %arg1, %c0_i32 : i32, i32
  }
  func.func @transform_3(%arg0: i32, %arg1: i32) -> (i32, i32) {
    %c0_i32 = arith.constant 0 : i32
    %c0_i32_0 = arith.constant 0 : i32
    return %arg0, %c0_i32 : i32, i32
  }
}

</mosaic_0001>

<llo_original>
// kernel: tpu_custom_call.1
$region0: #{tpu_custom_call.1}
  #allocation0 [shape = 'u32[]', space=smem, size = 0x4, offset = 0x4, fixed_abs, tag = 'smem constant byte address 0x4 - core index']
  #allocation1 [shape = 'u32[144,128]{1,0:T(1,128)}', space=vmem, size = 0x12000, scoped, tag = 'internal scratch']
  #allocation2 [shape = 'f32[128,1]{1,0:T(8,128)}', space=vmem, size = 0x10000, scoped, tag = 'scratch operand']
  #allocation3 [shape = 'f32[128,1]{1,0:T(8,128)}', space=vmem, size = 0x10000, scoped, tag = 'scratch operand']
  #allocation4 [shape = 'f32[128,1]{1,0:T(8,128)}', space=vmem, size = 0x10000, scoped, tag = 'scratch operand']
  %s0 = inlined_call_operand.vmem [shape: f32[128,128], index: 0, kind: input, shape index: {}]
  %s1 = inlined_call_operand.vmem [shape: f32[8,128], index: 1, kind: input, shape index: {}]
  %s2 = inlined_call_operand.vmem [shape: f32[128,8], index: 2, kind: input, shape index: {}]
  %s3 = inlined_call_operand.vmem [shape: f32[256,8], index: 3, kind: output, shape index: {}]
  %s4 = sld [smem:[#allocation0]]
  $region53: #{tpu_custom_call.1} parent=0
    _
  %s6 = ssub.s32 1, %s4
  %s7 = scalar_select 0, %s6, %s4
  loop: start=0, step=1, limit=4
  $region2: #{tpu_custom_call.1} parent=0 // loop_pre_header
    _
  $region3: #{tpu_custom_call.1} parent=0 // loop_header
    %s9 = sphi 0, %s13
    %p10 = scmp.ge.s32.totalorder %s9, 4
    %s16 = sphi 0, %s28
    %s17 = sphi 0, %s24
    %s18 = sphi 0, %s16
    %s19 = sphi 0, %s17
    %s20 = sphi 0, %s18
    %s21 = sphi 0, %s19
    %s29 = sphi 0, %s29
    %s31 = sphi 0, %s29
    %s32 = sphi 0, %s31
    %s46 = sphi 0, %s32
    %s52 = sphi 0, %s54
    %s55 = sphi 0, %s52
    %s56 = sphi 0, %s55
    %s72 = sphi 0, %s56
    %s78 = sphi 0, %s80
    %s81 = sphi 0, %s78
    %s82 = sphi 0, %s81
    %s98 = sphi 0, %s82
    %s104 = sphi 0, %s106
    %s107 = sphi 0, %s104
    %s108 = sphi 0, %s107
    %s124 = sphi 0, %s108
  $region4: #{tpu_custom_call.1} parent=0 // loop_header_branch
    %12 = sbr.rel (%p10) target = $region8
  $region5: #{tpu_custom_call.1} parent=0 // loop_body
    %s14 = ssub.s32 %s9, 1
    %s15 = ssub.s32 %s9, 2
    %s22 = sadd.s32 1, %s17
    %p23 = scmp.ge.s32.totalorder %s22, 1
    %s24 = scalar_select %p23, 0, %s22
    %s25 = sadd.s32 1, %s16
    %s26 = scalar_select %p23, %s25, %s16
    %p27 = scmp.ge.s32.totalorder %s26, 2
    %s28 = scalar_select %p27, 0, %s26
    %s30 = sadd.s32 %s29, 1
    %p33 = scmp.eq.s32.totalorder %s9, 1
    %p34 = scmp.ne.s32.totalorder %s29, %s31
    %p35 = scmp.eq.s32.totalorder %s9, 0
    %p36 = por %p34, %p35
    %p37 = scmp.ne.s32.totalorder %s29, %s31
    %p38 = scmp.eq.s32.totalorder %s14, 1
    %p39 = por %p37, %p38
    %p40 = scmp.ne.s32.totalorder %s31, %s32
    %p41 = scmp.eq.s32.totalorder %s14, 0
    %p42 = por %p40, %p41
    %p43 = scmp.ne.s32.totalorder %s31, %s32
    %p44 = scmp.eq.s32.totalorder %s15, 1
    %p45 = por %p43, %p44
    %p47 = scmp.ne.s32.totalorder %s32, %s46
    %p48 = scmp.eq.s32.totalorder %s15, 0
    %p49 = por %p47, %p48
    %s50 = ssub.s32 %s17, %s24
    %p51 = scmp.eq.s32.totalorder %s50, 0
    %s53 = sadd.s32 %s52, 1
    %s54 = scalar_select %p51, %s52, %s53
    %p57 = pneg %p51
    %p58 = scmp.eq.s32.totalorder %s9, 1
    %p59 = por %p57, %p58
    %p60 = scmp.ne.s32.totalorder %s52, %s55
    %p61 = scmp.eq.s32.totalorder %s9, 0
    %p62 = por %p60, %p61
    %p63 = scmp.ne.s32.totalorder %s52, %s55
    %p64 = scmp.eq.s32.totalorder %s14, 1
    %p65 = por %p63, %p64
    %p66 = scmp.ne.s32.totalorder %s55, %s56
    %p67 = scmp.eq.s32.totalorder %s14, 0
    %p68 = por %p66, %p67
    %p69 = scmp.ne.s32.totalorder %s55, %s56
    %p70 = scmp.eq.s32.totalorder %s15, 1
    %p71 = por %p69, %p70
    %p73 = scmp.ne.s32.totalorder %s56, %s72
    %p74 = scmp.eq.s32.totalorder %s15, 0
    %p75 = por %p73, %p74
    %s76 = ssub.s32 %s17, %s24
    %p77 = scmp.eq.s32.totalorder %s76, 0
    %s79 = sadd.s32 %s78, 1
    %s80 = scalar_select %p77, %s78, %s79
    %p83 = pneg %p77
    %p84 = scmp.eq.s32.totalorder %s9, 1
    %p85 = por %p83, %p84
    %p86 = scmp.ne.s32.totalorder %s78, %s81
    %p87 = scmp.eq.s32.totalorder %s9, 0
    %p88 = por %p86, %p87
    %p89 = scmp.ne.s32.totalorder %s78, %s81
    %p90 = scmp.eq.s32.totalorder %s14, 1
    %p91 = por %p89, %p90
    %p92 = scmp.ne.s32.totalorder %s81, %s82
    %p93 = scmp.eq.s32.totalorder %s14, 0
    %p94 = por %p92, %p93
    %p95 = scmp.ne.s32.totalorder %s81, %s82
    %p96 = scmp.eq.s32.totalorder %s15, 1
    %p97 = por %p95, %p96
    %p99 = scmp.ne.s32.totalorder %s82, %s98
    %p100 = scmp.eq.s32.totalorder %s15, 0
    %p101 = por %p99, %p100
    %s102 = ssub.s32 %s16, %s28
    %p103 = scmp.eq.s32.totalorder %s102, 0
    %s105 = sadd.s32 %s104, 1
    %s106 = scalar_select %p103, %s104, %s105
    %p109 = pneg %p103
    %p110 = scmp.eq.s32.totalorder %s9, 1
    %p111 = por %p109, %p110
    %p112 = scmp.ne.s32.totalorder %s104, %s107
    %p113 = scmp.eq.s32.totalorder %s9, 0
    %p114 = por %p112, %p113
    %p115 = scmp.ne.s32.totalorder %s104, %s107
    %p116 = scmp.eq.s32.totalorder %s14, 1
    %p117 = por %p115, %p116
    %p118 = scmp.ne.s32.totalorder %s107, %s108
    %p119 = scmp.eq.s32.totalorder %s14, 0
    %p120 = por %p118, %p119
    %p121 = scmp.ne.s32.totalorder %s107, %s108
    %p122 = scmp.eq.s32.totalorder %s15, 1
    %p123 = por %p121, %p122
    %p125 = scmp.ne.s32.totalorder %s108, %s124
    %p126 = scmp.eq.s32.totalorder %s15, 0
    %p127 = por %p125, %p126
    %p128 = scmp.le.s32.totalorder 1, %s9
    %p129 = scmp.lt.s32.totalorder %s9, 3
    %p130 = pnand %p128, %p129
    %p131 = pneg %p130
    // Predicated region
    $region9: #{tpu_custom_call.1} parent=5 // pred_check
      _
    $region10: #{tpu_custom_call.1} parent=5 // pred_check_branch
      %133 = sbr.rel (%p130) target = $region12
    $region11: #{tpu_custom_call.1} parent=5 // pred_region
      %s134 = ssub.s32 %s9, 1
      // Predicated region
      $region13: #{tpu_custom_call.1} parent=11 // pred_check
        %p135 = pneg %p42
      $region14: #{tpu_custom_call.1} parent=11 // pred_check_branch
        %137 = sbr.rel (%p135) target = $region16
      $region15: #{tpu_custom_call.1} parent=11 // pred_region
        _
      $region16: #{tpu_custom_call.1} parent=11 // pred_fallthru
        _
      // Predicated region
      $region17: #{tpu_custom_call.1} parent=11 // pred_check
        %p138 = pneg %p68
      $region18: #{tpu_custom_call.1} parent=11 // pred_check_branch
        %140 = sbr.rel (%p138) target = $region20
      $region19: #{tpu_custom_call.1} parent=11 // pred_region
        %p141 = scmp.lt.s32.totalorder %s19, 0
        %s142 = scalar_select %p141, %s19, 0
        %s143 = smul.addr %s142, 8
        %s144 = scalar_lea.vmem %s1, %s143
      $region20: #{tpu_custom_call.1} parent=11 // pred_fallthru
        _
      // Predicated region
      $region21: #{tpu_custom_call.1} parent=11 // pred_check
        %p145 = pneg %p94
      $region22: #{tpu_custom_call.1} parent=11 // pred_check_branch
        %147 = sbr.rel (%p145) target = $region24
      $region23: #{tpu_custom_call.1} parent=11 // pred_region
        %s148 = smul.u32 16, %s19
        %p149 = scmp.lt.s32.totalorder %s148, 15
        %s150 = scalar_select %p149, %s148, 15
        %s151 = smul.addr %s150, 8
        %s152 = scalar_lea.vmem %s2, %s151
        %s153 = smul.u32 16, %s19
      $region24: #{tpu_custom_call.1} parent=11 // pred_fallthru
        _
    $region12: #{tpu_custom_call.1} parent=5 // pred_fallthru
      _
    %p154 = scmp.lt.s32.totalorder %s9, 2
    // Predicated region
    $region25: #{tpu_custom_call.1} parent=5 // pred_check
      %p155 = pneg %p154
    $region26: #{tpu_custom_call.1} parent=5 // pred_check_branch
      %157 = sbr.rel (%p155) target = $region28
    $region27: #{tpu_custom_call.1} parent=5 // pred_region
      _
    $region28: #{tpu_custom_call.1} parent=5 // pred_fallthru
      _
    %p158 = scmp.le.s32.totalorder 1, %s9
    %p159 = scmp.lt.s32.totalorder %s9, 3
    %p160 = pnand %p158, %p159
    %p161 = pneg %p160
    // Predicated region
    $region29: #{tpu_custom_call.1} parent=5 // pred_check
      _
    $region30: #{tpu_custom_call.1} parent=5 // pred_check_branch
      %163 = sbr.rel (%p160) target = $region32
    $region31: #{tpu_custom_call.1} parent=5 // pred_region
      %s164 = ssub.s32 %s9, 1
      %p165 = pneg %p42
      %p166 = pneg %p39
      %p167 = scmp.lt.s32.totalorder %s19, 0
      %s168 = scalar_select %p167, %s19, 0
      %s169 = smul.addr %s168, 8
      %s170 = scalar_lea.vmem %s1, %s169
      %p171 = pneg %p68
      %p172 = pneg %p65
      %s173 = smul.u32 16, %s19
      %p174 = scmp.lt.s32.totalorder %s173, 15
      %s175 = scalar_select %p174, %s173, 15
      %s176 = smul.addr %s175, 8
      %s177 = scalar_lea.vmem %s2, %s176
      %p178 = pneg %p94
      %p179 = pneg %p91
      %p180 = pneg %p120
      %p181 = pneg %p117
      %s182 = smul.u32 16, %s18
      %p183 = scmp.lt.s32.totalorder %s182, 31
      %s184 = scalar_select %p183, %s182, 31
      %s185 = smul.addr %s184, 8
      %s186 = scalar_lea.vmem %s3, %s185
      %p187 = scmp.lt.s32.totalorder %s19, 0
      %s188 = scalar_select %p187, %s19, 0
      %s189 = smul.addr %s188, 8
      %s190 = scalar_lea.vmem %s1, %s189
      %s191 = smul.u32 16, %s19
      %p192 = scmp.lt.s32.totalorder %s191, 15
      %s193 = scalar_select %p192, %s191, 15
      %s194 = smul.addr %s193, 8
      %s195 = scalar_lea.vmem %s2, %s194
      %s196 = smul.u32 16, %s19
      %s197 = smul.u32 16, %s18
      %p198 = scmp.lt.s32.totalorder %s197, 31
      %s199 = scalar_select %p198, %s197, 31
      %s200 = smul.addr %s199, 8
      %s201 = scalar_lea.vmem %s3, %s200
      %s202 = smul.u32 16, %s18
      %p203 = scmp.eq.s32.totalorder %s19, 0
      // Predicated region
      $region33: #{tpu_custom_call.1} parent=31 // pred_check
        %p204 = pneg %p203
      $region34: #{tpu_custom_call.1} parent=31 // pred_check_branch
        %206 = sbr.rel (%p204) target = $region36
      $region35: #{tpu_custom_call.1} parent=31 // pred_region
        %vm207 = vcmask 7168
        %208 = vst.msk [vmem:[#allocation2] sm:$0xff] %vm207, 0.0
        %209 = vst.msk [vmem:[#allocation2 + $0x8] sm:$0xff] %vm207, 0.0
        %210 = vst.msk [vmem:[#allocation2 + $0x10] sm:$0xff] %vm207, 0.0
        %211 = vst.msk [vmem:[#allocation2 + $0x18] sm:$0xff] %vm207, 0.0
        %212 = vst.msk [vmem:[#allocation2 + $0x20] sm:$0xff] %vm207, 0.0
        %213 = vst.msk [vmem:[#allocation2 + $0x28] sm:$0xff] %vm207, 0.0
        %214 = vst.msk [vmem:[#allocation2 + $0x30] sm:$0xff] %vm207, 0.0
        %215 = vst.msk [vmem:[#allocation2 + $0x38] sm:$0xff] %vm207, 0.0
        %216 = vst.msk [vmem:[#allocation2 + $0x40] sm:$0xff] %vm207, 0.0
        %217 = vst.msk [vmem:[#allocation2 + $0x48] sm:$0xff] %vm207, 0.0
        %218 = vst.msk [vmem:[#allocation2 + $0x50] sm:$0xff] %vm207, 0.0
        %219 = vst.msk [vmem:[#allocation2 + $0x58] sm:$0xff] %vm207, 0.0
        %220 = vst.msk [vmem:[#allocation2 + $0x60] sm:$0xff] %vm207, 0.0
        %221 = vst.msk [vmem:[#allocation2 + $0x68] sm:$0xff] %vm207, 0.0
        %222 = vst.msk [vmem:[#allocation2 + $0x70] sm:$0xff] %vm207, 0.0
        %223 = vst.msk [vmem:[#allocation2 + $0x78] sm:$0xff] %vm207, 0.0
        %vm224 = vcmask 64512
        %225 = vst.msk [vmem:[%s201] sm:$0xff] %vm224, 0.0
        %226 = vst.msk [vmem:[%s201 + $0x8] sm:$0xff] %vm224, 0.0
        %227 = vst.msk [vmem:[%s201 + $0x10] sm:$0xff] %vm224, 0.0
        %228 = vst.msk [vmem:[%s201 + $0x18] sm:$0xff] %vm224, 0.0
        %229 = vst.msk [vmem:[%s201 + $0x20] sm:$0xff] %vm224, 0.0
        %230 = vst.msk [vmem:[%s201 + $0x28] sm:$0xff] %vm224, 0.0
        %231 = vst.msk [vmem:[%s201 + $0x30] sm:$0xff] %vm224, 0.0
        %232 = vst.msk [vmem:[%s201 + $0x38] sm:$0xff] %vm224, 0.0
        %233 = vst.msk [vmem:[%s201 + $0x40] sm:$0xff] %vm224, 0.0
        %234 = vst.msk [vmem:[%s201 + $0x48] sm:$0xff] %vm224, 0.0
        %235 = vst.msk [vmem:[%s201 + $0x50] sm:$0xff] %vm224, 0.0
        %236 = vst.msk [vmem:[%s201 + $0x58] sm:$0xff] %vm224, 0.0
        %237 = vst.msk [vmem:[%s201 + $0x60] sm:$0xff] %vm224, 0.0
        %238 = vst.msk [vmem:[%s201 + $0x68] sm:$0xff] %vm224, 0.0
        %239 = vst.msk [vmem:[%s201 + $0x70] sm:$0xff] %vm224, 0.0
        %240 = vst.msk [vmem:[%s201 + $0x78] sm:$0xff] %vm224, 0.0
        %v241 = vlaneseq
        %v242 = vshrl.u32 %v241, 7
        %v243 = vadd.s32 %v242, 8
        %v244 = vadd.s32 %v242, 16
        %v245 = vadd.s32 %v242, 24
        %v246 = vadd.s32 %v242, 32
        %v247 = vadd.s32 %v242, 40
        %v248 = vadd.s32 %v242, 48
        %v249 = vadd.s32 %v242, 56
        %v250 = vadd.s32 %v242, 64
        %v251 = vadd.s32 %v242, 72
        %v252 = vadd.s32 %v242, 80
        %v253 = vadd.s32 %v242, 88
        %v254 = vadd.s32 %v242, 96
        %v255 = vadd.s32 %v242, 104
        %v256 = vadd.s32 %v242, 112
        %v257 = vadd.s32 %v242, 120
        %s258 = smul.u32 %s18, 128
        %v259 = vstv %s258
        %v260 = vadd.s32 %v242, %v259
        %v261 = vadd.s32 %v243, %v259
        %v262 = vadd.s32 %v244, %v259
        %v263 = vadd.s32 %v245, %v259
        %v264 = vadd.s32 %v246, %v259
        %v265 = vadd.s32 %v247, %v259
        %v266 = vadd.s32 %v248, %v259
        %v267 = vadd.s32 %v249, %v259
        %v268 = vadd.s32 %v250, %v259
        %v269 = vadd.s32 %v251, %v259
        %v270 = vadd.s32 %v252, %v259
        %v271 = vadd.s32 %v253, %v259
        %v272 = vadd.s32 %v254, %v259
        %v273 = vadd.s32 %v255, %v259
        %v274 = vadd.s32 %v256, %v259
        %v275 = vadd.s32 %v257, %v259
        %v276 = vcvt.s32.f32 %v260
        %v277 = vcvt.s32.f32 %v261
        %v278 = vcvt.s32.f32 %v262
        %v279 = vcvt.s32.f32 %v263
        %v280 = vcvt.s32.f32 %v264
        %v281 = vcvt.s32.f32 %v265
        %v282 = vcvt.s32.f32 %v266
        %v283 = vcvt.s32.f32 %v267
        %v284 = vcvt.s32.f32 %v268
        %v285 = vcvt.s32.f32 %v269
        %v286 = vcvt.s32.f32 %v270
        %v287 = vcvt.s32.f32 %v271
        %v288 = vcvt.s32.f32 %v272
        %v289 = vcvt.s32.f32 %v273
        %v290 = vcvt.s32.f32 %v274
        %v291 = vcvt.s32.f32 %v275
        %v292 = vrcp.pop 16.0
        %v293 = vmul.f32 %v276, %v292
        %v294 = vmul.f32 %v277, %v292
        %v295 = vmul.f32 %v278, %v292
        %v296 = vmul.f32 %v279, %v292
        %v297 = vmul.f32 %v280, %v292
        %v298 = vmul.f32 %v281, %v292
        %v299 = vmul.f32 %v282, %v292
        %v300 = vmul.f32 %v283, %v292
        %v301 = vmul.f32 %v284, %v292
        %v302 = vmul.f32 %v285, %v292
        %v303 = vmul.f32 %v286, %v292
        %v304 = vmul.f32 %v287, %v292
        %v305 = vmul.f32 %v288, %v292
        %v306 = vmul.f32 %v289, %v292
        %v307 = vmul.f32 %v290, %v292
        %v308 = vmul.f32 %v291, %v292
        %v309 = vfloor.f32 %v293
        %v310 = vfloor.f32 %v294
        %v311 = vfloor.f32 %v295
        %v312 = vfloor.f32 %v296
        %v313 = vfloor.f32 %v297
        %v314 = vfloor.f32 %v298
        %v315 = vfloor.f32 %v299
        %v316 = vfloor.f32 %v300
        %v317 = vfloor.f32 %v301
        %v318 = vfloor.f32 %v302
        %v319 = vfloor.f32 %v303
        %v320 = vfloor.f32 %v304
        %v321 = vfloor.f32 %v305
        %v322 = vfloor.f32 %v306
        %v323 = vfloor.f32 %v307
        %v324 = vfloor.f32 %v308
        %325 = vst.msk [vmem:[#allocation3] sm:$0xff] %vm207, %v309
        %326 = vst.msk [vmem:[#allocation3 + $0x8] sm:$0xff] %vm207, %v310
        %327 = vst.msk [vmem:[#allocation3 + $0x10] sm:$0xff] %vm207, %v311
        %328 = vst.msk [vmem:[#allocation3 + $0x18] sm:$0xff] %vm207, %v312
        %329 = vst.msk [vmem:[#allocation3 + $0x20] sm:$0xff] %vm207, %v313
        %330 = vst.msk [vmem:[#allocation3 + $0x28] sm:$0xff] %vm207, %v314
        %331 = vst.msk [vmem:[#allocation3 + $0x30] sm:$0xff] %vm207, %v315
        %332 = vst.msk [vmem:[#allocation3 + $0x38] sm:$0xff] %vm207, %v316
        %333 = vst.msk [vmem:[#allocation3 + $0x40] sm:$0xff] %vm207, %v317
        %334 = vst.msk [vmem:[#allocation3 + $0x48] sm:$0xff] %vm207, %v318
        %335 = vst.msk [vmem:[#allocation3 + $0x50] sm:$0xff] %vm207, %v319
        %336 = vst.msk [vmem:[#allocation3 + $0x58] sm:$0xff] %vm207, %v320
        %337 = vst.msk [vmem:[#allocation3 + $0x60] sm:$0xff] %vm207, %v321
        %338 = vst.msk [vmem:[#allocation3 + $0x68] sm:$0xff] %vm207, %v322
        %339 = vst.msk [vmem:[#allocation3 + $0x70] sm:$0xff] %vm207, %v323
        %340 = vst.msk [vmem:[#allocation3 + $0x78] sm:$0xff] %vm207, %v324
        %v341 = vmul.f32 %v309, 16.0
        %v342 = vmul.f32 %v310, 16.0
        %v343 = vmul.f32 %v311, 16.0
        %v344 = vmul.f32 %v312, 16.0
        %v345 = vmul.f32 %v313, 16.0
        %v346 = vmul.f32 %v314, 16.0
        %v347 = vmul.f32 %v315, 16.0
        %v348 = vmul.f32 %v316, 16.0
        %v349 = vmul.f32 %v317, 16.0
        %v350 = vmul.f32 %v318, 16.0
        %v351 = vmul.f32 %v319, 16.0
        %v352 = vmul.f32 %v320, 16.0
        %v353 = vmul.f32 %v321, 16.0
        %v354 = vmul.f32 %v322, 16.0
        %v355 = vmul.f32 %v323, 16.0
        %v356 = vmul.f32 %v324, 16.0
        %v357 = vsub.f32 %v276, %v341
        %v358 = vsub.f32 %v277, %v342
        %v359 = vsub.f32 %v278, %v343
        %v360 = vsub.f32 %v279, %v344
        %v361 = vsub.f32 %v280, %v345
        %v362 = vsub.f32 %v281, %v346
        %v363 = vsub.f32 %v282, %v347
        %v364 = vsub.f32 %v283, %v348
        %v365 = vsub.f32 %v284, %v349
        %v366 = vsub.f32 %v285, %v350
        %v367 = vsub.f32 %v286, %v351
        %v368 = vsub.f32 %v287, %v352
        %v369 = vsub.f32 %v288, %v353
        %v370 = vsub.f32 %v289, %v354
        %v371 = vsub.f32 %v290, %v355
        %v372 = vsub.f32 %v291, %v356
        %373 = vst.msk [vmem:[#allocation4] sm:$0xff] %vm207, %v357
        %374 = vst.msk [vmem:[#allocation4 + $0x8] sm:$0xff] %vm207, %v358
        %375 = vst.msk [vmem:[#allocation4 + $0x10] sm:$0xff] %vm207, %v359
        %376 = vst.msk [vmem:[#allocation4 + $0x18] sm:$0xff] %vm207, %v360
        %377 = vst.msk [vmem:[#allocation4 + $0x20] sm:$0xff] %vm207, %v361
        %378 = vst.msk [vmem:[#allocation4 + $0x28] sm:$0xff] %vm207, %v362
        %379 = vst.msk [vmem:[#allocation4 + $0x30] sm:$0xff] %vm207, %v363
        %380 = vst.msk [vmem:[#allocation4 + $0x38] sm:$0xff] %vm207, %v364
        %381 = vst.msk [vmem:[#allocation4 + $0x40] sm:$0xff] %vm207, %v365
        %382 = vst.msk [vmem:[#allocation4 + $0x48] sm:$0xff] %vm207, %v366
        %383 = vst.msk [vmem:[#allocation4 + $0x50] sm:$0xff] %vm207, %v367
        %384 = vst.msk [vmem:[#allocation4 + $0x58] sm:$0xff] %vm207, %v368
        %385 = vst.msk [vmem:[#allocation4 + $0x60] sm:$0xff] %vm207, %v369
        %386 = vst.msk [vmem:[#allocation4 + $0x68] sm:$0xff] %vm207, %v370
        %387 = vst.msk [vmem:[#allocation4 + $0x70] sm:$0xff] %vm207, %v371
        %388 = vst.msk [vmem:[#allocation4 + $0x78] sm:$0xff] %vm207, %v372
      $region36: #{tpu_custom_call.1} parent=31 // pred_fallthru
        _
      %v389 = vld [vmem:[#allocation3] sm:$0xff]
      %v390 = vld [vmem:[#allocation3 + $0x8] sm:$0xff]
      %v391 = vld [vmem:[#allocation3 + $0x10] sm:$0xff]
      %v392 = vld [vmem:[#allocation3 + $0x18] sm:$0xff]
      %v393 = vld [vmem:[#allocation3 + $0x20] sm:$0xff]
      %v394 = vld [vmem:[#allocation3 + $0x28] sm:$0xff]
      %v395 = vld [vmem:[#allocation3 + $0x30] sm:$0xff]
      %v396 = vld [vmem:[#allocation3 + $0x38] sm:$0xff]
      %v397 = vld [vmem:[#allocation3 + $0x40] sm:$0xff]
      %v398 = vld [vmem:[#allocation3 + $0x48] sm:$0xff]
      %v399 = vld [vmem:[#allocation3 + $0x50] sm:$0xff]
      %v400 = vld [vmem:[#allocation3 + $0x58] sm:$0xff]
      %v401 = vld [vmem:[#allocation3 + $0x60] sm:$0xff]
      %v402 = vld [vmem:[#allocation3 + $0x68] sm:$0xff]
      %v403 = vld [vmem:[#allocation3 + $0x70] sm:$0xff]
      %v404 = vld [vmem:[#allocation3 + $0x78] sm:$0xff]
      %v405 = vld [vmem:[#allocation4] sm:$0xff]
      %v406 = vld [vmem:[#allocation4 + $0x8] sm:$0xff]
      %v407 = vld [vmem:[#allocation4 + $0x10] sm:$0xff]
      %v408 = vld [vmem:[#allocation4 + $0x18] sm:$0xff]
      %v409 = vld [vmem:[#allocation4 + $0x20] sm:$0xff]
      %v410 = vld [vmem:[#allocation4 + $0x28] sm:$0xff]
      %v411 = vld [vmem:[#allocation4 + $0x30] sm:$0xff]
      %v412 = vld [vmem:[#allocation4 + $0x38] sm:$0xff]
      %v413 = vld [vmem:[#allocation4 + $0x40] sm:$0xff]
      %v414 = vld [vmem:[#allocation4 + $0x48] sm:$0xff]
      %v415 = vld [vmem:[#allocation4 + $0x50] sm:$0xff]
      %v416 = vld [vmem:[#allocation4 + $0x58] sm:$0xff]
      %v417 = vld [vmem:[#allocation4 + $0x60] sm:$0xff]
      %v418 = vld [vmem:[#allocation4 + $0x68] sm:$0xff]
      %v419 = vld [vmem:[#allocation4 + $0x70] sm:$0xff]
      %v420 = vld [vmem:[#allocation4 + $0x78] sm:$0xff]
      %v421 = vld [vmem:[%s190] sm:$0x1]
      %v422 = vld [vmem:[%s190 + $0x1] sm:$0x1]
      %v423 = vld [vmem:[%s190 + $0x2] sm:$0x1]
      %v424 = vld [vmem:[%s190 + $0x3] sm:$0x1]
      %v425 = vld [vmem:[%s190 + $0x4] sm:$0x1]
      %v426 = vld [vmem:[%s190 + $0x5] sm:$0x1]
      %v427 = vlaneseq
      %v428 = vshrl.u32 %v427, 7
      %v429 = vsub.s32 0, %v428
      %v430 = vrot.slane %v421, %v429
      %432 = vset.pattern.permute.xlu0 0
      %433 = vperm.xlu0 %432, %v389
      %v434 = vpop.permute.xlu0 %433
      %437 = vset.pattern.permute.xlu0 0
      %438 = vperm.xlu0 %437, %v390
      %v439 = vpop.permute.xlu0 %438
      %442 = vset.pattern.permute.xlu0 0
      %443 = vperm.xlu0 %442, %v391
      %v444 = vpop.permute.xlu0 %443
      %447 = vset.pattern.permute.xlu0 0
      %448 = vperm.xlu0 %447, %v392
      %v449 = vpop.permute.xlu0 %448
      %452 = vset.pattern.permute.xlu0 0
      %453 = vperm.xlu0 %452, %v393
      %v454 = vpop.permute.xlu0 %453
      %457 = vset.pattern.permute.xlu0 0
      %458 = vperm.xlu0 %457, %v394
      %v459 = vpop.permute.xlu0 %458
      %462 = vset.pattern.permute.xlu0 0
      %463 = vperm.xlu0 %462, %v395
      %v464 = vpop.permute.xlu0 %463
      %467 = vset.pattern.permute.xlu0 0
      %468 = vperm.xlu0 %467, %v396
      %v469 = vpop.permute.xlu0 %468
      %472 = vset.pattern.permute.xlu0 0
      %473 = vperm.xlu0 %472, %v397
      %v474 = vpop.permute.xlu0 %473
      %477 = vset.pattern.permute.xlu0 0
      %478 = vperm.xlu0 %477, %v398
      %v479 = vpop.permute.xlu0 %478
      %482 = vset.pattern.permute.xlu0 0
      %483 = vperm.xlu0 %482, %v399
      %v484 = vpop.permute.xlu0 %483
      %487 = vset.pattern.permute.xlu0 0
      %488 = vperm.xlu0 %487, %v400
      %v489 = vpop.permute.xlu0 %488
      %492 = vset.pattern.permute.xlu0 0
      %493 = vperm.xlu0 %492, %v401
      %v494 = vpop.permute.xlu0 %493
      %497 = vset.pattern.permute.xlu0 0
      %498 = vperm.xlu0 %497, %v402
      %v499 = vpop.permute.xlu0 %498
      %502 = vset.pattern.permute.xlu0 0
      %503 = vperm.xlu0 %502, %v403
      %v504 = vpop.permute.xlu0 %503
      %507 = vset.pattern.permute.xlu0 0
      %508 = vperm.xlu0 %507, %v404
      %v509 = vpop.permute.xlu0 %508
      %v511 = vsub.f32 %v430, %v434
      %v512 = vsub.f32 %v430, %v439
      %v513 = vsub.f32 %v430, %v444
      %v514 = vsub.f32 %v430, %v449
      %v515 = vsub.f32 %v430, %v454
      %v516 = vsub.f32 %v430, %v459
      %v517 = vsub.f32 %v430, %v464
      %v518 = vsub.f32 %v430, %v469
      %v519 = vsub.f32 %v430, %v474
      %v520 = vsub.f32 %v430, %v479
      %v521 = vsub.f32 %v430, %v484
      %v522 = vsub.f32 %v430, %v489
      %v523 = vsub.f32 %v430, %v494
      %v524 = vsub.f32 %v430, %v499
      %v525 = vsub.f32 %v430, %v504
      %v526 = vsub.f32 %v430, %v509
      %v527 = vlaneseq
      %v528 = vshrl.u32 %v527, 7
      %v529 = vsub.s32 0, %v528
      %v530 = vrot.slane %v422, %v529
      %532 = vset.pattern.permute.xlu0 0
      %533 = vperm.xlu0 %532, %v405
      %v534 = vpop.permute.xlu0 %533
      %537 = vset.pattern.permute.xlu0 0
      %538 = vperm.xlu0 %537, %v406
      %v539 = vpop.permute.xlu0 %538
      %542 = vset.pattern.permute.xlu0 0
      %543 = vperm.xlu0 %542, %v407
      %v544 = vpop.permute.xlu0 %543
      %547 = vset.pattern.permute.xlu0 0
      %548 = vperm.xlu0 %547, %v408
      %v549 = vpop.permute.xlu0 %548
      %552 = vset.pattern.permute.xlu0 0
      %553 = vperm.xlu0 %552, %v409
      %v554 = vpop.permute.xlu0 %553
      %557 = vset.pattern.permute.xlu0 0
      %558 = vperm.xlu0 %557, %v410
      %v559 = vpop.permute.xlu0 %558
      %562 = vset.pattern.permute.xlu0 0
      %563 = vperm.xlu0 %562, %v411
      %v564 = vpop.permute.xlu0 %563
      %567 = vset.pattern.permute.xlu0 0
      %568 = vperm.xlu0 %567, %v412
      %v569 = vpop.permute.xlu0 %568
      %572 = vset.pattern.permute.xlu0 0
      %573 = vperm.xlu0 %572, %v413
      %v574 = vpop.permute.xlu0 %573
      %577 = vset.pattern.permute.xlu0 0
      %578 = vperm.xlu0 %577, %v414
      %v579 = vpop.permute.xlu0 %578
      %582 = vset.pattern.permute.xlu0 0
      %583 = vperm.xlu0 %582, %v415
      %v584 = vpop.permute.xlu0 %583
      %587 = vset.pattern.permute.xlu0 0
      %588 = vperm.xlu0 %587, %v416
      %v589 = vpop.permute.xlu0 %588
      %592 = vset.pattern.permute.xlu0 0
      %593 = vperm.xlu0 %592, %v417
      %v594 = vpop.permute.xlu0 %593
      %597 = vset.pattern.permute.xlu0 0
      %598 = vperm.xlu0 %597, %v418
      %v599 = vpop.permute.xlu0 %598
      %602 = vset.pattern.permute.xlu0 0
      %603 = vperm.xlu0 %602, %v419
      %v604 = vpop.permute.xlu0 %603
      %607 = vset.pattern.permute.xlu0 0
      %608 = vperm.xlu0 %607, %v420
      %v609 = vpop.permute.xlu0 %608
      %v611 = vsub.f32 %v530, %v534
      %v612 = vsub.f32 %v530, %v539
      %v613 = vsub.f32 %v530, %v544
      %v614 = vsub.f32 %v530, %v549
      %v615 = vsub.f32 %v530, %v554
      %v616 = vsub.f32 %v530, %v559
      %v617 = vsub.f32 %v530, %v564
      %v618 = vsub.f32 %v530, %v569
      %v619 = vsub.f32 %v530, %v574
      %v620 = vsub.f32 %v530, %v579
      %v621 = vsub.f32 %v530, %v584
      %v622 = vsub.f32 %v530, %v589
      %v623 = vsub.f32 %v530, %v594
      %v624 = vsub.f32 %v530, %v599
      %v625 = vsub.f32 %v530, %v604
      %v626 = vsub.f32 %v530, %v609
      %v627 = vlaneseq
      %v628 = vshrl.u32 %v627, 7
      %v629 = vsub.s32 0, %v628
      %v630 = vrot.slane %v423, %v629
      %v631 = vmul.f32 %v630, %v511
      %v632 = vmul.f32 %v630, %v512
      %v633 = vmul.f32 %v630, %v513
      %v634 = vmul.f32 %v630, %v514
      %v635 = vmul.f32 %v630, %v515
      %v636 = vmul.f32 %v630, %v516
      %v637 = vmul.f32 %v630, %v517
      %v638 = vmul.f32 %v630, %v518
      %v639 = vmul.f32 %v630, %v519
      %v640 = vmul.f32 %v630, %v520
      %v641 = vmul.f32 %v630, %v521
      %v642 = vmul.f32 %v630, %v522
      %v643 = vmul.f32 %v630, %v523
      %v644 = vmul.f32 %v630, %v524
      %v645 = vmul.f32 %v630, %v525
      %v646 = vmul.f32 %v630, %v526
      %v647 = vlaneseq
      %v648 = vshrl.u32 %v647, 7
      %v649 = vsub.s32 0, %v648
      %v650 = vrot.slane %v424, %v649
      %v651 = vmul.f32 %v650, %v611
      %v652 = vmul.f32 %v650, %v612
      %v653 = vmul.f32 %v650, %v613
      %v654 = vmul.f32 %v650, %v614
      %v655 = vmul.f32 %v650, %v615
      %v656 = vmul.f32 %v650, %v616
      %v657 = vmul.f32 %v650, %v617
      %v658 = vmul.f32 %v650, %v618
      %v659 = vmul.f32 %v650, %v619
      %v660 = vmul.f32 %v650, %v620
      %v661 = vmul.f32 %v650, %v621
      %v662 = vmul.f32 %v650, %v622
      %v663 = vmul.f32 %v650, %v623
      %v664 = vmul.f32 %v650, %v624
      %v665 = vmul.f32 %v650, %v625
      %v666 = vmul.f32 %v650, %v626
      %v667 = vadd.f32 %v631, %v651
      %v668 = vadd.f32 %v632, %v652
      %v669 = vadd.f32 %v633, %v653
      %v670 = vadd.f32 %v634, %v654
      %v671 = vadd.f32 %v635, %v655
      %v672 = vadd.f32 %v636, %v656
      %v673 = vadd.f32 %v637, %v657
      %v674 = vadd.f32 %v638, %v658
      %v675 = vadd.f32 %v639, %v659
      %v676 = vadd.f32 %v640, %v660
      %v677 = vadd.f32 %v641, %v661
      %v678 = vadd.f32 %v642, %v662
      %v679 = vadd.f32 %v643, %v663
      %v680 = vadd.f32 %v644, %v664
      %v681 = vadd.f32 %v645, %v665
      %v682 = vadd.f32 %v646, %v666
      %v683 = vmul.f32 %v511, %v667
      %v684 = vmul.f32 %v512, %v668
      %v685 = vmul.f32 %v513, %v669
      %v686 = vmul.f32 %v514, %v670
      %v687 = vmul.f32 %v515, %v671
      %v688 = vmul.f32 %v516, %v672
      %v689 = vmul.f32 %v517, %v673
      %v690 = vmul.f32 %v518, %v674
      %v691 = vmul.f32 %v519, %v675
      %v692 = vmul.f32 %v520, %v676
      %v693 = vmul.f32 %v521, %v677
      %v694 = vmul.f32 %v522, %v678
      %v695 = vmul.f32 %v523, %v679
      %v696 = vmul.f32 %v524, %v680
      %v697 = vmul.f32 %v525, %v681
      %v698 = vmul.f32 %v526, %v682
      %v699 = vmul.f32 %v611, %v611
      %v700 = vmul.f32 %v612, %v612
      %v701 = vmul.f32 %v613, %v613
      %v702 = vmul.f32 %v614, %v614
      %v703 = vmul.f32 %v615, %v615
      %v704 = vmul.f32 %v616, %v616
      %v705 = vmul.f32 %v617, %v617
      %v706 = vmul.f32 %v618, %v618
      %v707 = vmul.f32 %v619, %v619
      %v708 = vmul.f32 %v620, %v620
      %v709 = vmul.f32 %v621, %v621
      %v710 = vmul.f32 %v622, %v622
      %v711 = vmul.f32 %v623, %v623
      %v712 = vmul.f32 %v624, %v624
      %v713 = vmul.f32 %v625, %v625
      %v714 = vmul.f32 %v626, %v626
      %v715 = vlaneseq
      %v716 = vshrl.u32 %v715, 7
      %v717 = vsub.s32 0, %v716
      %v718 = vrot.slane %v425, %v717
      %v719 = vmul.f32 %v718, %v699
      %v720 = vmul.f32 %v718, %v700
      %v721 = vmul.f32 %v718, %v701
      %v722 = vmul.f32 %v718, %v702
      %v723 = vmul.f32 %v718, %v703
      %v724 = vmul.f32 %v718, %v704
      %v725 = vmul.f32 %v718, %v705
      %v726 = vmul.f32 %v718, %v706
      %v727 = vmul.f32 %v718, %v707
      %v728 = vmul.f32 %v718, %v708
      %v729 = vmul.f32 %v718, %v709
      %v730 = vmul.f32 %v718, %v710
      %v731 = vmul.f32 %v718, %v711
      %v732 = vmul.f32 %v718, %v712
      %v733 = vmul.f32 %v718, %v713
      %v734 = vmul.f32 %v718, %v714
      %v735 = vadd.f32 %v683, %v719
      %v736 = vadd.f32 %v684, %v720
      %v737 = vadd.f32 %v685, %v721
      %v738 = vadd.f32 %v686, %v722
      %v739 = vadd.f32 %v687, %v723
      %v740 = vadd.f32 %v688, %v724
      %v741 = vadd.f32 %v689, %v725
      %v742 = vadd.f32 %v690, %v726
      %v743 = vadd.f32 %v691, %v727
      %v744 = vadd.f32 %v692, %v728
      %v745 = vadd.f32 %v693, %v729
      %v746 = vadd.f32 %v694, %v730
      %v747 = vadd.f32 %v695, %v731
      %v748 = vadd.f32 %v696, %v732
      %v749 = vadd.f32 %v697, %v733
      %v750 = vadd.f32 %v698, %v734
      %v751 = vmin.f32 %v735, 0.0
      %v752 = vmin.f32 %v736, 0.0
      %v753 = vmin.f32 %v737, 0.0
      %v754 = vmin.f32 %v738, 0.0
      %v755 = vmin.f32 %v739, 0.0
      %v756 = vmin.f32 %v740, 0.0
      %v757 = vmin.f32 %v741, 0.0
      %v758 = vmin.f32 %v742, 0.0
      %v759 = vmin.f32 %v743, 0.0
      %v760 = vmin.f32 %v744, 0.0
      %v761 = vmin.f32 %v745, 0.0
      %v762 = vmin.f32 %v746, 0.0
      %v763 = vmin.f32 %v747, 0.0
      %v764 = vmin.f32 %v748, 0.0
      %v765 = vmin.f32 %v749, 0.0
      %v766 = vmin.f32 %v750, 0.0
      %v767 = vmul.f32 %v751, 1.442695
      %v768 = vpow.pop %v767
      %v769 = vmul.f32 %v752, 1.442695
      %v770 = vpow.pop %v769
      %v771 = vmul.f32 %v753, 1.442695
      %v772 = vpow.pop %v771
      %v773 = vmul.f32 %v754, 1.442695
      %v774 = vpow.pop %v773
      %v775 = vmul.f32 %v755, 1.442695
      %v776 = vpow.pop %v775
      %v777 = vmul.f32 %v756, 1.442695
      %v778 = vpow.pop %v777
      %v779 = vmul.f32 %v757, 1.442695
      %v780 = vpow.pop %v779
      %v781 = vmul.f32 %v758, 1.442695
      %v782 = vpow.pop %v781
      %v783 = vmul.f32 %v759, 1.442695
      %v784 = vpow.pop %v783
      %v785 = vmul.f32 %v760, 1.442695
      %v786 = vpow.pop %v785
      %v787 = vmul.f32 %v761, 1.442695
      %v788 = vpow.pop %v787
      %v789 = vmul.f32 %v762, 1.442695
      %v790 = vpow.pop %v789
      %v791 = vmul.f32 %v763, 1.442695
      %v792 = vpow.pop %v791
      %v793 = vmul.f32 %v764, 1.442695
      %v794 = vpow.pop %v793
      %v795 = vmul.f32 %v765, 1.442695
      %v796 = vpow.pop %v795
      %v797 = vmul.f32 %v766, 1.442695
      %v798 = vpow.pop %v797
      %v799 = vlaneseq
      %v800 = vshrl.u32 %v799, 7
      %v801 = vsub.s32 0, %v800
      %v802 = vrot.slane %v426, %v801
      %v803 = vmul.f32 %v802, %v768
      %v804 = vmul.f32 %v802, %v770
      %v805 = vmul.f32 %v802, %v772
      %v806 = vmul.f32 %v802, %v774
      %v807 = vmul.f32 %v802, %v776
      %v808 = vmul.f32 %v802, %v778
      %v809 = vmul.f32 %v802, %v780
      %v810 = vmul.f32 %v802, %v782
      %v811 = vmul.f32 %v802, %v784
      %v812 = vmul.f32 %v802, %v786
      %v813 = vmul.f32 %v802, %v788
      %v814 = vmul.f32 %v802, %v790
      %v815 = vmul.f32 %v802, %v792
      %v816 = vmul.f32 %v802, %v794
      %v817 = vmul.f32 %v802, %v796
      %v818 = vmul.f32 %v802, %v798
      %v819 = vmin.f32 %v803, 0.99
      %v820 = vmin.f32 %v804, 0.99
      %v821 = vmin.f32 %v805, 0.99
      %v822 = vmin.f32 %v806, 0.99
      %v823 = vmin.f32 %v807, 0.99
      %v824 = vmin.f32 %v808, 0.99
      %v825 = vmin.f32 %v809, 0.99
      %v826 = vmin.f32 %v810, 0.99
      %v827 = vmin.f32 %v811, 0.99
      %v828 = vmin.f32 %v812, 0.99
      %v829 = vmin.f32 %v813, 0.99
      %v830 = vmin.f32 %v814, 0.99
      %v831 = vmin.f32 %v815, 0.99
      %v832 = vmin.f32 %v816, 0.99
      %v833 = vmin.f32 %v817, 0.99
      %v834 = vmin.f32 %v818, 0.99
      %vm835 = vcmp.lt.f32.partialorder %v819, 0.003921569
      %vm836 = vcmp.lt.f32.partialorder %v820, 0.003921569
      %vm837 = vcmp.lt.f32.partialorder %v821, 0.003921569
      %vm838 = vcmp.lt.f32.partialorder %v822, 0.003921569
      %vm839 = vcmp.lt.f32.partialorder %v823, 0.003921569
      %vm840 = vcmp.lt.f32.partialorder %v824, 0.003921569
      %vm841 = vcmp.lt.f32.partialorder %v825, 0.003921569
      %vm842 = vcmp.lt.f32.partialorder %v826, 0.003921569
      %vm843 = vcmp.lt.f32.partialorder %v827, 0.003921569
      %vm844 = vcmp.lt.f32.partialorder %v828, 0.003921569
      %vm845 = vcmp.lt.f32.partialorder %v829, 0.003921569
      %vm846 = vcmp.lt.f32.partialorder %v830, 0.003921569
      %vm847 = vcmp.lt.f32.partialorder %v831, 0.003921569
      %vm848 = vcmp.lt.f32.partialorder %v832, 0.003921569
      %vm849 = vcmp.lt.f32.partialorder %v833, 0.003921569
      %vm850 = vcmp.lt.f32.partialorder %v834, 0.003921569
      %v851 = vsel %vm835, 0.0, %v819
      %v852 = vsel %vm836, 0.0, %v820
      %v853 = vsel %vm837, 0.0, %v821
      %v854 = vsel %vm838, 0.0, %v822
      %v855 = vsel %vm839, 0.0, %v823
      %v856 = vsel %vm840, 0.0, %v824
      %v857 = vsel %vm841, 0.0, %v825
      %v858 = vsel %vm842, 0.0, %v826
      %v859 = vsel %vm843, 0.0, %v827
      %v860 = vsel %vm844, 0.0, %v828
      %v861 = vsel %vm845, 0.0, %v829
      %v862 = vsel %vm846, 0.0, %v830
      %v863 = vsel %vm847, 0.0, %v831
      %v864 = vsel %vm848, 0.0, %v832
      %v865 = vsel %vm849, 0.0, %v833
      %v866 = vsel %vm850, 0.0, %v834
      %v867 = vsub.f32 1.0, %v851
      %v868 = vsub.f32 1.0, %v852
      %v869 = vsub.f32 1.0, %v853
      %v870 = vsub.f32 1.0, %v854
      %v871 = vsub.f32 1.0, %v855
      %v872 = vsub.f32 1.0, %v856
      %v873 = vsub.f32 1.0, %v857
      %v874 = vsub.f32 1.0, %v858
      %v875 = vsub.f32 1.0, %v859
      %v876 = vsub.f32 1.0, %v860
      %v877 = vsub.f32 1.0, %v861
      %v878 = vsub.f32 1.0, %v862
      %v879 = vsub.f32 1.0, %v863
      %v880 = vsub.f32 1.0, %v864
      %v881 = vsub.f32 1.0, %v865
      %v882 = vsub.f32 1.0, %v866
      %v883 = vlog2.pop %v867
      %v884 = vmul.f32 %v883, 0.6931472
      %v885 = vlog2.pop %v868
      %v886 = vmul.f32 %v885, 0.6931472
      %v887 = vlog2.pop %v869
      %v888 = vmul.f32 %v887, 0.6931472
      %v889 = vlog2.pop %v870
      %v890 = vmul.f32 %v889, 0.6931472
      %v891 = vlog2.pop %v871
      %v892 = vmul.f32 %v891, 0.6931472
      %v893 = vlog2.pop %v872
      %v894 = vmul.f32 %v893, 0.6931472
      %v895 = vlog2.pop %v873
      %v896 = vmul.f32 %v895, 0.6931472
      %v897 = vlog2.pop %v874
      %v898 = vmul.f32 %v897, 0.6931472
      %v899 = vlog2.pop %v875
      %v900 = vmul.f32 %v899, 0.6931472
      %v901 = vlog2.pop %v876
      %v902 = vmul.f32 %v901, 0.6931472
      %v903 = vlog2.pop %v877
      %v904 = vmul.f32 %v903, 0.6931472
      %v905 = vlog2.pop %v878
      %v906 = vmul.f32 %v905, 0.6931472
      %v907 = vlog2.pop %v879
      %v908 = vmul.f32 %v907, 0.6931472
      %v909 = vlog2.pop %v880
      %v910 = vmul.f32 %v909, 0.6931472
      %v911 = vlog2.pop %v881
      %v912 = vmul.f32 %v911, 0.6931472
      %v913 = vlog2.pop %v882
      %v914 = vmul.f32 %v913, 0.6931472
      %v915 = vld [vmem:[%s0] sm:$0xff]
      %v916 = vld [vmem:[%s0 + $0x8] sm:$0xff]
      %v917 = vld [vmem:[%s0 + $0x10] sm:$0xff]
      %v918 = vld [vmem:[%s0 + $0x18] sm:$0xff]
      %v919 = vld [vmem:[%s0 + $0x20] sm:$0xff]
      %v920 = vld [vmem:[%s0 + $0x28] sm:$0xff]
      %v921 = vld [vmem:[%s0 + $0x30] sm:$0xff]
      %v922 = vld [vmem:[%s0 + $0x38] sm:$0xff]
      %v923 = vld [vmem:[%s0 + $0x40] sm:$0xff]
      %v924 = vld [vmem:[%s0 + $0x48] sm:$0xff]
      %v925 = vld [vmem:[%s0 + $0x50] sm:$0xff]
      %v926 = vld [vmem:[%s0 + $0x58] sm:$0xff]
      %v927 = vld [vmem:[%s0 + $0x60] sm:$0xff]
      %v928 = vld [vmem:[%s0 + $0x68] sm:$0xff]
      %v929 = vld [vmem:[%s0 + $0x70] sm:$0xff]
      %v930 = vld [vmem:[%s0 + $0x78] sm:$0xff]
      %931 = vmatprep.subr.mxu0 0.0
      %932 = vmatpush1.msra.mxu0 %v915
      %933 = vmatprep.subr.mxu0 0.0
      %934 = vmatpush1.msra.mxu0 %v916
      %935 = vmatprep.subr.mxu0 0.0
      %936 = vmatpush1.msra.mxu0 %v917
      %937 = vmatprep.subr.mxu0 0.0
      %938 = vmatpush1.msra.mxu0 %v918
      %939 = vmatprep.subr.mxu0 0.0
      %940 = vmatpush1.msra.mxu0 %v919
      %941 = vmatprep.subr.mxu0 0.0
      %942 = vmatpush1.msra.mxu0 %v920
      %943 = vmatprep.subr.mxu0 0.0
      %944 = vmatpush1.msra.mxu0 %v921
      %945 = vmatprep.subr.mxu0 0.0
      %946 = vmatpush1.msra.mxu0 %v922
      %947 = vmatprep.subr.mxu0 0.0
      %948 = vmatpush1.msra.mxu0 %v923
      %949 = vmatprep.subr.mxu0 0.0
      %950 = vmatpush1.msra.mxu0 %v924
      %951 = vmatprep.subr.mxu0 0.0
      %952 = vmatpush1.msra.mxu0 %v925
      %953 = vmatprep.subr.mxu0 0.0
      %954 = vmatpush1.msra.mxu0 %v926
      %955 = vmatprep.subr.mxu0 0.0
      %956 = vmatpush1.msra.mxu0 %v927
      %957 = vmatprep.subr.mxu0 0.0
      %958 = vmatpush1.msra.mxu0 %v928
      %959 = vmatprep.subr.mxu0 0.0
      %960 = vmatpush1.msra.mxu0 %v929
      %961 = vmatprep.subr.mxu0 0.0
      %962 = vmatpush1.msra.mxu0 %v930
      %963 = vmatprep.subr.mxu0 0.0
      %964 = vmatpush1.msra.mxu0 0.0
      %965 = vmatprep.subr.mxu0 0.0
      %966 = vmatpush1.msra.mxu0 0.0
      %967 = vmatprep.subr.mxu0 0.0
      %968 = vmatpush1.msra.mxu0 0.0
      %969 = vmatprep.subr.mxu0 0.0
      %970 = vmatpush1.msra.mxu0 0.0
      %971 = vmatprep.subr.mxu0 0.0
      %972 = vmatpush1.msra.mxu0 0.0
      %973 = vmatprep.subr.mxu0 0.0
      %974 = vmatpush1.msra.mxu0 0.0
      %975 = vmatprep.subr.mxu0 0.0
      %976 = vmatpush1.msra.mxu0 0.0
      %977 = vmatprep.subr.mxu0 0.0
      %978 = vmatpush1.msra.mxu0 0.0
      %979 = vmatprep.subr.mxu0 0.0
      %980 = vmatpush1.msra.mxu0 0.0
      %981 = vmatprep.subr.mxu0 0.0
      %982 = vmatpush1.msra.mxu0 0.0
      %983 = vmatprep.subr.mxu0 0.0
      %984 = vmatpush1.msra.mxu0 0.0
      %985 = vmatprep.subr.mxu0 0.0
      %986 = vmatpush1.msra.mxu0 0.0
      %987 = vmatprep.subr.mxu0 0.0
      %988 = vmatpush1.msra.mxu0 0.0
      %989 = vmatprep.subr.mxu0 0.0
      %990 = vmatpush1.msra.mxu0 0.0
      %991 = vmatprep.subr.mxu0 0.0
      %992 = vmatpush1.msra.mxu0 0.0
      %993 = vmatprep.subr.mxu0 0.0
      %994 = vmatpush1.msra.mxu0 0.0
      %995 = vmatprep.mubr.f32.mxu0 0.0
      %996 = vmatmul.mubr.f32.gmra.mrb[0].mxu0 %v884
      %v997 = vpop.f32.mrb[0].mxu0
      %v998 = vadd.f32 0.0, %v997
      %v999 = vpop.f32.mrb[0].mxu0
      %1000 = vmatprep.mubr.f32.mxu0 0.0
      %1001 = vmatmul.mubr.f32.gmra.mrb[0].mxu0 %v886
      %v1002 = vpop.f32.mrb[0].mxu0
      %v1003 = vadd.f32 0.0, %v1002
      %v1004 = vpop.f32.mrb[0].mxu0
      %1005 = vmatprep.mubr.f32.mxu0 0.0
      %1006 = vmatmul.mubr.f32.gmra.mrb[0].mxu0 %v888
      %v1007 = vpop.f32.mrb[0].mxu0
      %v1008 = vadd.f32 0.0, %v1007
      %v1009 = vpop.f32.mrb[0].mxu0
      %1010 = vmatprep.mubr.f32.mxu0 0.0
      %1011 = vmatmul.mubr.f32.gmra.mrb[0].mxu0 %v890
      %v1012 = vpop.f32.mrb[0].mxu0
      %v1013 = vadd.f32 0.0, %v1012
      %v1014 = vpop.f32.mrb[0].mxu0
      %1015 = vmatprep.mubr.f32.mxu0 0.0
      %1016 = vmatmul.mubr.f32.gmra.mrb[0].mxu0 %v892
      %v1017 = vpop.f32.mrb[0].mxu0
      %v1018 = vadd.f32 0.0, %v1017
      %v1019 = vpop.f32.mrb[0].mxu0
      %1020 = vmatprep.mubr.f32.mxu0 0.0
      %1021 = vmatmul.mubr.f32.gmra.mrb[0].mxu0 %v894
      %v1022 = vpop.f32.mrb[0].mxu0
      %v1023 = vadd.f32 0.0, %v1022
      %v1024 = vpop.f32.mrb[0].mxu0
      %1025 = vmatprep.mubr.f32.mxu0 0.0
      %1026 = vmatmul.mubr.f32.gmra.mrb[0].mxu0 %v896
      %v1027 = vpop.f32.mrb[0].mxu0
      %v1028 = vadd.f32 0.0, %v1027
      %v1029 = vpop.f32.mrb[0].mxu0
      %1030 = vmatprep.mubr.f32.mxu0 0.0
      %1031 = vmatmul.mubr.f32.gmra.mrb[0].mxu0 %v898
      %v1032 = vpop.f32.mrb[0].mxu0
      %v1033 = vadd.f32 0.0, %v1032
      %v1034 = vpop.f32.mrb[0].mxu0
      %1035 = vmatprep.mubr.f32.mxu0 0.0
      %1036 = vmatmul.mubr.f32.gmra.mrb[0].mxu0 %v900
      %v1037 = vpop.f32.mrb[0].mxu0
      %v1038 = vadd.f32 0.0, %v1037
      %v1039 = vpop.f32.mrb[0].mxu0
      %1040 = vmatprep.mubr.f32.mxu0 0.0
      %1041 = vmatmul.mubr.f32.gmra.mrb[0].mxu0 %v902
      %v1042 = vpop.f32.mrb[0].mxu0
      %v1043 = vadd.f32 0.0, %v1042
      %v1044 = vpop.f32.mrb[0].mxu0
      %1045 = vmatprep.mubr.f32.mxu0 0.0
      %1046 = vmatmul.mubr.f32.gmra.mrb[0].mxu0 %v904
      %v1047 = vpop.f32.mrb[0].mxu0
      %v1048 = vadd.f32 0.0, %v1047
      %v1049 = vpop.f32.mrb[0].mxu0
      %1050 = vmatprep.mubr.f32.mxu0 0.0
      %1051 = vmatmul.mubr.f32.gmra.mrb[0].mxu0 %v906
      %v1052 = vpop.f32.mrb[0].mxu0
      %v1053 = vadd.f32 0.0, %v1052
      %v1054 = vpop.f32.mrb[0].mxu0
      %1055 = vmatprep.mubr.f32.mxu0 0.0
      %1056 = vmatmul.mubr.f32.gmra.mrb[0].mxu0 %v908
      %v1057 = vpop.f32.mrb[0].mxu0
      %v1058 = vadd.f32 0.0, %v1057
      %v1059 = vpop.f32.mrb[0].mxu0
      %1060 = vmatprep.mubr.f32.mxu0 0.0
      %1061 = vmatmul.mubr.f32.gmra.mrb[0].mxu0 %v910
      %v1062 = vpop.f32.mrb[0].mxu0
      %v1063 = vadd.f32 0.0, %v1062
      %v1064 = vpop.f32.mrb[0].mxu0
      %1065 = vmatprep.mubr.f32.mxu0 0.0
      %1066 = vmatmul.mubr.f32.gmra.mrb[0].mxu0 %v912
      %v1067 = vpop.f32.mrb[0].mxu0
      %v1068 = vadd.f32 0.0, %v1067
      %v1069 = vpop.f32.mrb[0].mxu0
      %1070 = vmatprep.mubr.f32.mxu0 0.0
      %1071 = vmatmul.mubr.f32.gmra.mrb[0].mxu0 %v914
      %v1072 = vpop.f32.mrb[0].mxu0
      %v1073 = vadd.f32 0.0, %v1072
      %v1074 = vpop.f32.mrb[0].mxu0
      %1075 = vdwg.mxu0
      %v1076 = vld [vmem:[#allocation2] sm:$0xff]
      %v1077 = vld [vmem:[#allocation2 + $0x8] sm:$0xff]
      %v1078 = vld [vmem:[#allocation2 + $0x10] sm:$0xff]
      %v1079 = vld [vmem:[#allocation2 + $0x18] sm:$0xff]
      %v1080 = vld [vmem:[#allocation2 + $0x20] sm:$0xff]
      %v1081 = vld [vmem:[#allocation2 + $0x28] sm:$0xff]
      %v1082 = vld [vmem:[#allocation2 + $0x30] sm:$0xff]
      %v1083 = vld [vmem:[#allocation2 + $0x38] sm:$0xff]
      %v1084 = vld [vmem:[#allocation2 + $0x40] sm:$0xff]
      %v1085 = vld [vmem:[#allocation2 + $0x48] sm:$0xff]
      %v1086 = vld [vmem:[#allocation2 + $0x50] sm:$0xff]
      %v1087 = vld [vmem:[#allocation2 + $0x58] sm:$0xff]
      %v1088 = vld [vmem:[#allocation2 + $0x60] sm:$0xff]
      %v1089 = vld [vmem:[#allocation2 + $0x68] sm:$0xff]
      %v1090 = vld [vmem:[#allocation2 + $0x70] sm:$0xff]
      %v1091 = vld [vmem:[#allocation2 + $0x78] sm:$0xff]
      %1093 = vset.pattern.permute.xlu0 0
      %1094 = vperm.xlu0 %1093, %v1076
      %v1095 = vpop.permute.xlu0 %1094
      %1098 = vset.pattern.permute.xlu0 0
      %1099 = vperm.xlu0 %1098, %v1077
      %v1100 = vpop.permute.xlu0 %1099
      %1103 = vset.pattern.permute.xlu0 0
      %1104 = vperm.xlu0 %1103, %v1078
      %v1105 = vpop.permute.xlu0 %1104
      %1108 = vset.pattern.permute.xlu0 0
      %1109 = vperm.xlu0 %1108, %v1079
      %v1110 = vpop.permute.xlu0 %1109
      %1113 = vset.pattern.permute.xlu0 0
      %1114 = vperm.xlu0 %1113, %v1080
      %v1115 = vpop.permute.xlu0 %1114
      %1118 = vset.pattern.permute.xlu0 0
      %1119 = vperm.xlu0 %1118, %v1081
      %v1120 = vpop.permute.xlu0 %1119
      %1123 = vset.pattern.permute.xlu0 0
      %1124 = vperm.xlu0 %1123, %v1082
      %v1125 = vpop.permute.xlu0 %1124
      %1128 = vset.pattern.permute.xlu0 0
      %1129 = vperm.xlu0 %1128, %v1083
      %v1130 = vpop.permute.xlu0 %1129
      %1133 = vset.pattern.permute.xlu0 0
      %1134 = vperm.xlu0 %1133, %v1084
      %v1135 = vpop.permute.xlu0 %1134
      %1138 = vset.pattern.permute.xlu0 0
      %1139 = vperm.xlu0 %1138, %v1085
      %v1140 = vpop.permute.xlu0 %1139
      %1143 = vset.pattern.permute.xlu0 0
      %1144 = vperm.xlu0 %1143, %v1086
      %v1145 = vpop.permute.xlu0 %1144
      %1148 = vset.pattern.permute.xlu0 0
      %1149 = vperm.xlu0 %1148, %v1087
      %v1150 = vpop.permute.xlu0 %1149
      %1153 = vset.pattern.permute.xlu0 0
      %1154 = vperm.xlu0 %1153, %v1088
      %v1155 = vpop.permute.xlu0 %1154
      %1158 = vset.pattern.permute.xlu0 0
      %1159 = vperm.xlu0 %1158, %v1089
      %v1160 = vpop.permute.xlu0 %1159
      %1163 = vset.pattern.permute.xlu0 0
      %1164 = vperm.xlu0 %1163, %v1090
      %v1165 = vpop.permute.xlu0 %1164
      %1168 = vset.pattern.permute.xlu0 0
      %1169 = vperm.xlu0 %1168, %v1091
      %v1170 = vpop.permute.xlu0 %1169
      %v1172 = vadd.f32 %v1095, %v998
      %v1173 = vadd.f32 %v1100, %v1003
      %v1174 = vadd.f32 %v1105, %v1008
      %v1175 = vadd.f32 %v1110, %v1013
      %v1176 = vadd.f32 %v1115, %v1018
      %v1177 = vadd.f32 %v1120, %v1023
      %v1178 = vadd.f32 %v1125, %v1028
      %v1179 = vadd.f32 %v1130, %v1033
      %v1180 = vadd.f32 %v1135, %v1038
      %v1181 = vadd.f32 %v1140, %v1043
      %v1182 = vadd.f32 %v1145, %v1048
      %v1183 = vadd.f32 %v1150, %v1053
      %v1184 = vadd.f32 %v1155, %v1058
      %v1185 = vadd.f32 %v1160, %v1063
      %v1186 = vadd.f32 %v1165, %v1068
      %v1187 = vadd.f32 %v1170, %v1073
      %v1188 = vmul.f32 %v1172, 1.442695
      %v1189 = vpow.pop %v1188
      %v1190 = vmul.f32 %v1173, 1.442695
      %v1191 = vpow.pop %v1190
      %v1192 = vmul.f32 %v1174, 1.442695
      %v1193 = vpow.pop %v1192
      %v1194 = vmul.f32 %v1175, 1.442695
      %v1195 = vpow.pop %v1194
      %v1196 = vmul.f32 %v1176, 1.442695
      %v1197 = vpow.pop %v1196
      %v1198 = vmul.f32 %v1177, 1.442695
      %v1199 = vpow.pop %v1198
      %v1200 = vmul.f32 %v1178, 1.442695
      %v1201 = vpow.pop %v1200
      %v1202 = vmul.f32 %v1179, 1.442695
      %v1203 = vpow.pop %v1202
      %v1204 = vmul.f32 %v1180, 1.442695
      %v1205 = vpow.pop %v1204
      %v1206 = vmul.f32 %v1181, 1.442695
      %v1207 = vpow.pop %v1206
      %v1208 = vmul.f32 %v1182, 1.442695
      %v1209 = vpow.pop %v1208
      %v1210 = vmul.f32 %v1183, 1.442695
      %v1211 = vpow.pop %v1210
      %v1212 = vmul.f32 %v1184, 1.442695
      %v1213 = vpow.pop %v1212
      %v1214 = vmul.f32 %v1185, 1.442695
      %v1215 = vpow.pop %v1214
      %v1216 = vmul.f32 %v1186, 1.442695
      %v1217 = vpow.pop %v1216
      %v1218 = vmul.f32 %v1187, 1.442695
      %v1219 = vpow.pop %v1218
      %vm1220 = vcmp.lt.f32.partialorder %v1189, 0.001
      %vm1221 = vcmp.lt.f32.partialorder %v1191, 0.001
      %vm1222 = vcmp.lt.f32.partialorder %v1193, 0.001
      %vm1223 = vcmp.lt.f32.partialorder %v1195, 0.001
      %vm1224 = vcmp.lt.f32.partialorder %v1197, 0.001
      %vm1225 = vcmp.lt.f32.partialorder %v1199, 0.001
      %vm1226 = vcmp.lt.f32.partialorder %v1201, 0.001
      %vm1227 = vcmp.lt.f32.partialorder %v1203, 0.001
      %vm1228 = vcmp.lt.f32.partialorder %v1205, 0.001
      %vm1229 = vcmp.lt.f32.partialorder %v1207, 0.001
      %vm1230 = vcmp.lt.f32.partialorder %v1209, 0.001
      %vm1231 = vcmp.lt.f32.partialorder %v1211, 0.001
      %vm1232 = vcmp.lt.f32.partialorder %v1213, 0.001
      %vm1233 = vcmp.lt.f32.partialorder %v1215, 0.001
      %vm1234 = vcmp.lt.f32.partialorder %v1217, 0.001
      %vm1235 = vcmp.lt.f32.partialorder %v1219, 0.001
      %v1236 = vsel %vm1220, 0.0, %v1189
      %v1237 = vsel %vm1221, 0.0, %v1191
      %v1238 = vsel %vm1222, 0.0, %v1193
      %v1239 = vsel %vm1223, 0.0, %v1195
      %v1240 = vsel %vm1224, 0.0, %v1197
      %v1241 = vsel %vm1225, 0.0, %v1199
      %v1242 = vsel %vm1226, 0.0, %v1201
      %v1243 = vsel %vm1227, 0.0, %v1203
      %v1244 = vsel %vm1228, 0.0, %v1205
      %v1245 = vsel %vm1229, 0.0, %v1207
      %v1246 = vsel %vm1230, 0.0, %v1209
      %v1247 = vsel %vm1231, 0.0, %v1211
      %v1248 = vsel %vm1232, 0.0, %v1213
      %v1249 = vsel %vm1233, 0.0, %v1215
      %v1250 = vsel %vm1234, 0.0, %v1217
      %v1251 = vsel %vm1235, 0.0, %v1219
      %v1252 = vmul.f32 %v851, %v1236
      %v1253 = vmul.f32 %v852, %v1237
      %v1254 = vmul.f32 %v853, %v1238
      %v1255 = vmul.f32 %v854, %v1239
      %v1256 = vmul.f32 %v855, %v1240
      %v1257 = vmul.f32 %v856, %v1241
      %v1258 = vmul.f32 %v857, %v1242
      %v1259 = vmul.f32 %v858, %v1243
      %v1260 = vmul.f32 %v859, %v1244
      %v1261 = vmul.f32 %v860, %v1245
      %v1262 = vmul.f32 %v861, %v1246
      %v1263 = vmul.f32 %v862, %v1247
      %v1264 = vmul.f32 %v863, %v1248
      %v1265 = vmul.f32 %v864, %v1249
      %v1266 = vmul.f32 %v865, %v1250
      %v1267 = vmul.f32 %v866, %v1251
      %v1268 = vld [vmem:[%s201] sm:$0xff]
      %v1269 = vld [vmem:[%s201 + $0x8] sm:$0xff]
      %v1270 = vld [vmem:[%s201 + $0x10] sm:$0xff]
      %v1271 = vld [vmem:[%s201 + $0x18] sm:$0xff]
      %v1272 = vld [vmem:[%s201 + $0x20] sm:$0xff]
      %v1273 = vld [vmem:[%s201 + $0x28] sm:$0xff]
      %v1274 = vld [vmem:[%s201 + $0x30] sm:$0xff]
      %v1275 = vld [vmem:[%s201 + $0x38] sm:$0xff]
      %v1276 = vld [vmem:[%s201 + $0x40] sm:$0xff]
      %v1277 = vld [vmem:[%s201 + $0x48] sm:$0xff]
      %v1278 = vld [vmem:[%s201 + $0x50] sm:$0xff]
      %v1279 = vld [vmem:[%s201 + $0x58] sm:$0xff]
      %v1280 = vld [vmem:[%s201 + $0x60] sm:$0xff]
      %v1281 = vld [vmem:[%s201 + $0x68] sm:$0xff]
      %v1282 = vld [vmem:[%s201 + $0x70] sm:$0xff]
      %v1283 = vld [vmem:[%s201 + $0x78] sm:$0xff]
      %v1284 = vld [vmem:[%s195] sm:$0xff]
      %v1285 = vld [vmem:[%s195 + $0x8] sm:$0xff]
      %v1286 = vld [vmem:[%s195 + $0x10] sm:$0xff]
      %v1287 = vld [vmem:[%s195 + $0x18] sm:$0xff]
      %v1288 = vld [vmem:[%s195 + $0x20] sm:$0xff]
      %v1289 = vld [vmem:[%s195 + $0x28] sm:$0xff]
      %v1290 = vld [vmem:[%s195 + $0x30] sm:$0xff]
      %v1291 = vld [vmem:[%s195 + $0x38] sm:$0xff]
      %v1292 = vld [vmem:[%s195 + $0x40] sm:$0xff]
      %v1293 = vld [vmem:[%s195 + $0x48] sm:$0xff]
      %v1294 = vld [vmem:[%s195 + $0x50] sm:$0xff]
      %v1295 = vld [vmem:[%s195 + $0x58] sm:$0xff]
      %v1296 = vld [vmem:[%s195 + $0x60] sm:$0xff]
      %v1297 = vld [vmem:[%s195 + $0x68] sm:$0xff]
      %v1298 = vld [vmem:[%s195 + $0x70] sm:$0xff]
      %v1299 = vld [vmem:[%s195 + $0x78] sm:$0xff]
      %1300 = vmatprep.subr.mxu0 0.0
      %1301 = vmatpush1.msra.mxu0 %v1284
      %1302 = vmatprep.subr.mxu0 0.0
      %1303 = vmatpush1.msra.mxu0 %v1285
      %1304 = vmatprep.subr.mxu0 0.0
      %1305 = vmatpush1.msra.mxu0 %v1286
      %1306 = vmatprep.subr.mxu0 0.0
      %1307 = vmatpush1.msra.mxu0 %v1287
      %1308 = vmatprep.subr.mxu0 0.0
      %1309 = vmatpush1.msra.mxu0 %v1288
      %1310 = vmatprep.subr.mxu0 0.0
      %1311 = vmatpush1.msra.mxu0 %v1289
      %1312 = vmatprep.subr.mxu0 0.0
      %1313 = vmatpush1.msra.mxu0 %v1290
      %1314 = vmatprep.subr.mxu0 0.0
      %1315 = vmatpush1.msra.mxu0 %v1291
      %1316 = vmatprep.subr.mxu0 0.0
      %1317 = vmatpush1.msra.mxu0 %v1292
      %1318 = vmatprep.subr.mxu0 0.0
      %1319 = vmatpush1.msra.mxu0 %v1293
      %1320 = vmatprep.subr.mxu0 0.0
      %1321 = vmatpush1.msra.mxu0 %v1294
      %1322 = vmatprep.subr.mxu0 0.0
      %1323 = vmatpush1.msra.mxu0 %v1295
      %1324 = vmatprep.subr.mxu0 0.0
      %1325 = vmatpush1.msra.mxu0 %v1296
      %1326 = vmatprep.subr.mxu0 0.0
      %1327 = vmatpush1.msra.mxu0 %v1297
      %1328 = vmatprep.subr.mxu0 0.0
      %1329 = vmatpush1.msra.mxu0 %v1298
      %1330 = vmatprep.subr.mxu0 0.0
      %1331 = vmatpush1.msra.mxu0 %v1299
      %1332 = vmatprep.subr.mxu0 0.0
      %1333 = vmatpush1.msra.mxu0 0.0
      %1334 = vmatprep.subr.mxu0 0.0
      %1335 = vmatpush1.msra.mxu0 0.0
      %1336 = vmatprep.subr.mxu0 0.0
      %1337 = vmatpush1.msra.mxu0 0.0
      %1338 = vmatprep.subr.mxu0 0.0
      %1339 = vmatpush1.msra.mxu0 0.0
      %1340 = vmatprep.subr.mxu0 0.0
      %1341 = vmatpush1.msra.mxu0 0.0
      %1342 = vmatprep.subr.mxu0 0.0
      %1343 = vmatpush1.msra.mxu0 0.0
      %1344 = vmatprep.subr.mxu0 0.0
      %1345 = vmatpush1.msra.mxu0 0.0
      %1346 = vmatprep.subr.mxu0 0.0
      %1347 = vmatpush1.msra.mxu0 0.0
      %1348 = vmatprep.subr.mxu0 0.0
      %1349 = vmatpush1.msra.mxu0 0.0
      %1350 = vmatprep.subr.mxu0 0.0
      %1351 = vmatpush1.msra.mxu0 0.0
      %1352 = vmatprep.subr.mxu0 0.0
      %1353 = vmatpush1.msra.mxu0 0.0
      %1354 = vmatprep.subr.mxu0 0.0
      %1355 = vmatpush1.msra.mxu0 0.0
      %1356 = vmatprep.subr.mxu0 0.0
      %1357 = vmatpush1.msra.mxu0 0.0
      %1358 = vmatprep.subr.mxu0 0.0
      %1359 = vmatpush1.msra.mxu0 0.0
      %1360 = vmatprep.subr.mxu0 0.0
      %1361 = vmatpush1.msra.mxu0 0.0
      %1362 = vmatprep.subr.mxu0 0.0
      %1363 = vmatpush1.msra.mxu0 0.0
      %1364 = vmatprep.mubr.f32.mxu0 0.0
      %1365 = vmatmul.mubr.f32.gmra.mrb[0].mxu0 %v1252
      %v1366 = vpop.f32.mrb[0].mxu0
      %v1367 = vadd.f32 0.0, %v1366
      %v1368 = vpop.f32.mrb[0].mxu0
      %1369 = vmatprep.mubr.f32.mxu0 0.0
      %1370 = vmatmul.mubr.f32.gmra.mrb[0].mxu0 %v1253
      %v1371 = vpop.f32.mrb[0].mxu0
      %v1372 = vadd.f32 0.0, %v1371
      %v1373 = vpop.f32.mrb[0].mxu0
      %1374 = vmatprep.mubr.f32.mxu0 0.0
      %1375 = vmatmul.mubr.f32.gmra.mrb[0].mxu0 %v1254
      %v1376 = vpop.f32.mrb[0].mxu0
      %v1377 = vadd.f32 0.0, %v1376
      %v1378 = vpop.f32.mrb[0].mxu0
      %1379 = vmatprep.mubr.f32.mxu0 0.0
      %1380 = vmatmul.mubr.f32.gmra.mrb[0].mxu0 %v1255
      %v1381 = vpop.f32.mrb[0].mxu0
      %v1382 = vadd.f32 0.0, %v1381
      %v1383 = vpop.f32.mrb[0].mxu0
      %1384 = vmatprep.mubr.f32.mxu0 0.0
      %1385 = vmatmul.mubr.f32.gmra.mrb[0].mxu0 %v1256
      %v1386 = vpop.f32.mrb[0].mxu0
      %v1387 = vadd.f32 0.0, %v1386
      %v1388 = vpop.f32.mrb[0].mxu0
      %1389 = vmatprep.mubr.f32.mxu0 0.0
      %1390 = vmatmul.mubr.f32.gmra.mrb[0].mxu0 %v1257
      %v1391 = vpop.f32.mrb[0].mxu0
      %v1392 = vadd.f32 0.0, %v1391
      %v1393 = vpop.f32.mrb[0].mxu0
      %1394 = vmatprep.mubr.f32.mxu0 0.0
      %1395 = vmatmul.mubr.f32.gmra.mrb[0].mxu0 %v1258
      %v1396 = vpop.f32.mrb[0].mxu0
      %v1397 = vadd.f32 0.0, %v1396
      %v1398 = vpop.f32.mrb[0].mxu0
      %1399 = vmatprep.mubr.f32.mxu0 0.0
      %1400 = vmatmul.mubr.f32.gmra.mrb[0].mxu0 %v1259
      %v1401 = vpop.f32.mrb[0].mxu0
      %v1402 = vadd.f32 0.0, %v1401
      %v1403 = vpop.f32.mrb[0].mxu0
      %1404 = vmatprep.mubr.f32.mxu0 0.0
      %1405 = vmatmul.mubr.f32.gmra.mrb[0].mxu0 %v1260
      %v1406 = vpop.f32.mrb[0].mxu0
      %v1407 = vadd.f32 0.0, %v1406
      %v1408 = vpop.f32.mrb[0].mxu0
      %1409 = vmatprep.mubr.f32.mxu0 0.0
      %1410 = vmatmul.mubr.f32.gmra.mrb[0].mxu0 %v1261
      %v1411 = vpop.f32.mrb[0].mxu0
      %v1412 = vadd.f32 0.0, %v1411
      %v1413 = vpop.f32.mrb[0].mxu0
      %1414 = vmatprep.mubr.f32.mxu0 0.0
      %1415 = vmatmul.mubr.f32.gmra.mrb[0].mxu0 %v1262
      %v1416 = vpop.f32.mrb[0].mxu0
      %v1417 = vadd.f32 0.0, %v1416
      %v1418 = vpop.f32.mrb[0].mxu0
      %1419 = vmatprep.mubr.f32.mxu0 0.0
      %1420 = vmatmul.mubr.f32.gmra.mrb[0].mxu0 %v1263
      %v1421 = vpop.f32.mrb[0].mxu0
      %v1422 = vadd.f32 0.0, %v1421
      %v1423 = vpop.f32.mrb[0].mxu0
      %1424 = vmatprep.mubr.f32.mxu0 0.0
      %1425 = vmatmul.mubr.f32.gmra.mrb[0].mxu0 %v1264
      %v1426 = vpop.f32.mrb[0].mxu0
      %v1427 = vadd.f32 0.0, %v1426
      %v1428 = vpop.f32.mrb[0].mxu0
      %1429 = vmatprep.mubr.f32.mxu0 0.0
      %1430 = vmatmul.mubr.f32.gmra.mrb[0].mxu0 %v1265
      %v1431 = vpop.f32.mrb[0].mxu0
      %v1432 = vadd.f32 0.0, %v1431
      %v1433 = vpop.f32.mrb[0].mxu0
      %1434 = vmatprep.mubr.f32.mxu0 0.0
      %1435 = vmatmul.mubr.f32.gmra.mrb[0].mxu0 %v1266
      %v1436 = vpop.f32.mrb[0].mxu0
      %v1437 = vadd.f32 0.0, %v1436
      %v1438 = vpop.f32.mrb[0].mxu0
      %1439 = vmatprep.mubr.f32.mxu0 0.0
      %1440 = vmatmul.mubr.f32.gmra.mrb[0].mxu0 %v1267
      %v1441 = vpop.f32.mrb[0].mxu0
      %v1442 = vadd.f32 0.0, %v1441
      %v1443 = vpop.f32.mrb[0].mxu0
      %1444 = vdwg.mxu0
      %v1445 = vadd.f32 %v1268, %v1367
      %v1446 = vadd.f32 %v1269, %v1372
      %v1447 = vadd.f32 %v1270, %v1377
      %v1448 = vadd.f32 %v1271, %v1382
      %v1449 = vadd.f32 %v1272, %v1387
      %v1450 = vadd.f32 %v1273, %v1392
      %v1451 = vadd.f32 %v1274, %v1397
      %v1452 = vadd.f32 %v1275, %v1402
      %v1453 = vadd.f32 %v1276, %v1407
      %v1454 = vadd.f32 %v1277, %v1412
      %v1455 = vadd.f32 %v1278, %v1417
      %v1456 = vadd.f32 %v1279, %v1422
      %v1457 = vadd.f32 %v1280, %v1427
      %v1458 = vadd.f32 %v1281, %v1432
      %v1459 = vadd.f32 %v1282, %v1437
      %v1460 = vadd.f32 %v1283, %v1442
      %vm1461 = vcmask 64512
      %1462 = vst.msk [vmem:[%s201] sm:$0xff] %vm1461, %v1445
      %1463 = vst.msk [vmem:[%s201 + $0x8] sm:$0xff] %vm1461, %v1446
      %1464 = vst.msk [vmem:[%s201 + $0x10] sm:$0xff] %vm1461, %v1447
      %1465 = vst.msk [vmem:[%s201 + $0x18] sm:$0xff] %vm1461, %v1448
      %1466 = vst.msk [vmem:[%s201 + $0x20] sm:$0xff] %vm1461, %v1449
      %1467 = vst.msk [vmem:[%s201 + $0x28] sm:$0xff] %vm1461, %v1450
      %1468 = vst.msk [vmem:[%s201 + $0x30] sm:$0xff] %vm1461, %v1451
      %1469 = vst.msk [vmem:[%s201 + $0x38] sm:$0xff] %vm1461, %v1452
      %1470 = vst.msk [vmem:[%s201 + $0x40] sm:$0xff] %vm1461, %v1453
      %1471 = vst.msk [vmem:[%s201 + $0x48] sm:$0xff] %vm1461, %v1454
      %1472 = vst.msk [vmem:[%s201 + $0x50] sm:$0xff] %vm1461, %v1455
      %1473 = vst.msk [vmem:[%s201 + $0x58] sm:$0xff] %vm1461, %v1456
      %1474 = vst.msk [vmem:[%s201 + $0x60] sm:$0xff] %vm1461, %v1457
      %1475 = vst.msk [vmem:[%s201 + $0x68] sm:$0xff] %vm1461, %v1458
      %1476 = vst.msk [vmem:[%s201 + $0x70] sm:$0xff] %vm1461, %v1459
      %1477 = vst.msk [vmem:[%s201 + $0x78] sm:$0xff] %vm1461, %v1460
      %v1478 = vld [vmem:[#allocation2] sm:$0xff]
      %v1479 = vld [vmem:[#allocation2 + $0x8] sm:$0xff]
      %v1480 = vld [vmem:[#allocation2 + $0x10] sm:$0xff]
      %v1481 = vld [vmem:[#allocation2 + $0x18] sm:$0xff]
      %v1482 = vld [vmem:[#allocation2 + $0x20] sm:$0xff]
      %v1483 = vld [vmem:[#allocation2 + $0x28] sm:$0xff]
      %v1484 = vld [vmem:[#allocation2 + $0x30] sm:$0xff]
      %v1485 = vld [vmem:[#allocation2 + $0x38] sm:$0xff]
      %v1486 = vld [vmem:[#allocation2 + $0x40] sm:$0xff]
      %v1487 = vld [vmem:[#allocation2 + $0x48] sm:$0xff]
      %v1488 = vld [vmem:[#allocation2 + $0x50] sm:$0xff]
      %v1489 = vld [vmem:[#allocation2 + $0x58] sm:$0xff]
      %v1490 = vld [vmem:[#allocation2 + $0x60] sm:$0xff]
      %v1491 = vld [vmem:[#allocation2 + $0x68] sm:$0xff]
      %v1492 = vld [vmem:[#allocation2 + $0x70] sm:$0xff]
      %v1493 = vld [vmem:[#allocation2 + $0x78] sm:$0xff]
      %1494 = vadd.xlane.f32.xlu0 %v884
      %v1495 = vpop.xlane.xlu0 %1494
      %1496 = vadd.xlane.f32.xlu0 %v886
      %v1497 = vpop.xlane.xlu0 %1496
      %1498 = vadd.xlane.f32.xlu0 %v888
      %v1499 = vpop.xlane.xlu0 %1498
      %1500 = vadd.xlane.f32.xlu0 %v890
      %v1501 = vpop.xlane.xlu0 %1500
      %1502 = vadd.xlane.f32.xlu0 %v892
      %v1503 = vpop.xlane.xlu0 %1502
      %1504 = vadd.xlane.f32.xlu0 %v894
      %v1505 = vpop.xlane.xlu0 %1504
      %1506 = vadd.xlane.f32.xlu0 %v896
      %v1507 = vpop.xlane.xlu0 %1506
      %1508 = vadd.xlane.f32.xlu0 %v898
      %v1509 = vpop.xlane.xlu0 %1508
      %1510 = vadd.xlane.f32.xlu0 %v900
      %v1511 = vpop.xlane.xlu0 %1510
      %1512 = vadd.xlane.f32.xlu0 %v902
      %v1513 = vpop.xlane.xlu0 %1512
      %1514 = vadd.xlane.f32.xlu0 %v904
      %v1515 = vpop.xlane.xlu0 %1514
      %1516 = vadd.xlane.f32.xlu0 %v906
      %v1517 = vpop.xlane.xlu0 %1516
      %1518 = vadd.xlane.f32.xlu0 %v908
      %v1519 = vpop.xlane.xlu0 %1518
      %1520 = vadd.xlane.f32.xlu0 %v910
      %v1521 = vpop.xlane.xlu0 %1520
      %1522 = vadd.xlane.f32.xlu0 %v912
      %v1523 = vpop.xlane.xlu0 %1522
      %1524 = vadd.xlane.f32.xlu0 %v914
      %v1525 = vpop.xlane.xlu0 %1524
      %v1526 = vadd.f32 %v1478, %v1495
      %v1527 = vadd.f32 %v1479, %v1497
      %v1528 = vadd.f32 %v1480, %v1499
      %v1529 = vadd.f32 %v1481, %v1501
      %v1530 = vadd.f32 %v1482, %v1503
      %v1531 = vadd.f32 %v1483, %v1505
      %v1532 = vadd.f32 %v1484, %v1507
      %v1533 = vadd.f32 %v1485, %v1509
      %v1534 = vadd.f32 %v1486, %v1511
      %v1535 = vadd.f32 %v1487, %v1513
      %v1536 = vadd.f32 %v1488, %v1515
      %v1537 = vadd.f32 %v1489, %v1517
      %v1538 = vadd.f32 %v1490, %v1519
      %v1539 = vadd.f32 %v1491, %v1521
      %v1540 = vadd.f32 %v1492, %v1523
      %v1541 = vadd.f32 %v1493, %v1525
      %vm1542 = vcmask 7168
      %1543 = vst.msk [vmem:[#allocation2] sm:$0xff] %vm1542, %v1526
      %1544 = vst.msk [vmem:[#allocation2 + $0x8] sm:$0xff] %vm1542, %v1527
      %1545 = vst.msk [vmem:[#allocation2 + $0x10] sm:$0xff] %vm1542, %v1528
      %1546 = vst.msk [vmem:[#allocation2 + $0x18] sm:$0xff] %vm1542, %v1529
      %1547 = vst.msk [vmem:[#allocation2 + $0x20] sm:$0xff] %vm1542, %v1530
      %1548 = vst.msk [vmem:[#allocation2 + $0x28] sm:$0xff] %vm1542, %v1531
      %1549 = vst.msk [vmem:[#allocation2 + $0x30] sm:$0xff] %vm1542, %v1532
      %1550 = vst.msk [vmem:[#allocation2 + $0x38] sm:$0xff] %vm1542, %v1533
      %1551 = vst.msk [vmem:[#allocation2 + $0x40] sm:$0xff] %vm1542, %v1534
      %1552 = vst.msk [vmem:[#allocation2 + $0x48] sm:$0xff] %vm1542, %v1535
      %1553 = vst.msk [vmem:[#allocation2 + $0x50] sm:$0xff] %vm1542, %v1536
      %1554 = vst.msk [vmem:[#allocation2 + $0x58] sm:$0xff] %vm1542, %v1537
      %1555 = vst.msk [vmem:[#allocation2 + $0x60] sm:$0xff] %vm1542, %v1538
      %1556 = vst.msk [vmem:[#allocation2 + $0x68] sm:$0xff] %vm1542, %v1539
      %1557 = vst.msk [vmem:[#allocation2 + $0x70] sm:$0xff] %vm1542, %v1540
      %1558 = vst.msk [vmem:[#allocation2 + $0x78] sm:$0xff] %vm1542, %v1541
      // Predicated region
      $region37: #{tpu_custom_call.1} parent=31 // pred_check
        %p1559 = pneg %p203
      $region38: #{tpu_custom_call.1} parent=31 // pred_check_branch
        %1561 = sbr.rel (%p1559) target = $region40
      $region39: #{tpu_custom_call.1} parent=31 // pred_region
        %v1562 = vld [vmem:[#allocation2] sm:$0xff]
        %v1563 = vld [vmem:[#allocation2 + $0x8] sm:$0xff]
        %v1564 = vld [vmem:[#allocation2 + $0x10] sm:$0xff]
        %v1565 = vld [vmem:[#allocation2 + $0x18] sm:$0xff]
        %v1566 = vld [vmem:[#allocation2 + $0x20] sm:$0xff]
        %v1567 = vld [vmem:[#allocation2 + $0x28] sm:$0xff]
        %v1568 = vld [vmem:[#allocation2 + $0x30] sm:$0xff]
        %v1569 = vld [vmem:[#allocation2 + $0x38] sm:$0xff]
        %v1570 = vld [vmem:[#allocation2 + $0x40] sm:$0xff]
        %v1571 = vld [vmem:[#allocation2 + $0x48] sm:$0xff]
        %v1572 = vld [vmem:[#allocation2 + $0x50] sm:$0xff]
        %v1573 = vld [vmem:[#allocation2 + $0x58] sm:$0xff]
        %v1574 = vld [vmem:[#allocation2 + $0x60] sm:$0xff]
        %v1575 = vld [vmem:[#allocation2 + $0x68] sm:$0xff]
        %v1576 = vld [vmem:[#allocation2 + $0x70] sm:$0xff]
        %v1577 = vld [vmem:[#allocation2 + $0x78] sm:$0xff]
        %v1578 = vmul.f32 %v1562, 1.442695
        %v1579 = vpow.pop %v1578
        %v1580 = vmul.f32 %v1563, 1.442695
        %v1581 = vpow.pop %v1580
        %v1582 = vmul.f32 %v1564, 1.442695
        %v1583 = vpow.pop %v1582
        %v1584 = vmul.f32 %v1565, 1.442695
        %v1585 = vpow.pop %v1584
        %v1586 = vmul.f32 %v1566, 1.442695
        %v1587 = vpow.pop %v1586
        %v1588 = vmul.f32 %v1567, 1.442695
        %v1589 = vpow.pop %v1588
        %v1590 = vmul.f32 %v1568, 1.442695
        %v1591 = vpow.pop %v1590
        %v1592 = vmul.f32 %v1569, 1.442695
        %v1593 = vpow.pop %v1592
        %v1594 = vmul.f32 %v1570, 1.442695
        %v1595 = vpow.pop %v1594
        %v1596 = vmul.f32 %v1571, 1.442695
        %v1597 = vpow.pop %v1596
        %v1598 = vmul.f32 %v1572, 1.442695
        %v1599 = vpow.pop %v1598
        %v1600 = vmul.f32 %v1573, 1.442695
        %v1601 = vpow.pop %v1600
        %v1602 = vmul.f32 %v1574, 1.442695
        %v1603 = vpow.pop %v1602
        %v1604 = vmul.f32 %v1575, 1.442695
        %v1605 = vpow.pop %v1604
        %v1606 = vmul.f32 %v1576, 1.442695
        %v1607 = vpow.pop %v1606
        %v1608 = vmul.f32 %v1577, 1.442695
        %v1609 = vpow.pop %v1608
        %vm1610 = vcmp.lt.f32.partialorder %v1579, 0.001
        %vm1611 = vcmp.lt.f32.partialorder %v1581, 0.001
        %vm1612 = vcmp.lt.f32.partialorder %v1583, 0.001
        %vm1613 = vcmp.lt.f32.partialorder %v1585, 0.001
        %vm1614 = vcmp.lt.f32.partialorder %v1587, 0.001
        %vm1615 = vcmp.lt.f32.partialorder %v1589, 0.001
        %vm1616 = vcmp.lt.f32.partialorder %v1591, 0.001
        %vm1617 = vcmp.lt.f32.partialorder %v1593, 0.001
        %vm1618 = vcmp.lt.f32.partialorder %v1595, 0.001
        %vm1619 = vcmp.lt.f32.partialorder %v1597, 0.001
        %vm1620 = vcmp.lt.f32.partialorder %v1599, 0.001
        %vm1621 = vcmp.lt.f32.partialorder %v1601, 0.001
        %vm1622 = vcmp.lt.f32.partialorder %v1603, 0.001
        %vm1623 = vcmp.lt.f32.partialorder %v1605, 0.001
        %vm1624 = vcmp.lt.f32.partialorder %v1607, 0.001
        %vm1625 = vcmp.lt.f32.partialorder %v1609, 0.001
        %v1626 = vsel %vm1610, 0.0, %v1579
        %v1627 = vsel %vm1611, 0.0, %v1581
        %v1628 = vsel %vm1612, 0.0, %v1583
        %v1629 = vsel %vm1613, 0.0, %v1585
        %v1630 = vsel %vm1614, 0.0, %v1587
        %v1631 = vsel %vm1615, 0.0, %v1589
        %v1632 = vsel %vm1616, 0.0, %v1591
        %v1633 = vsel %vm1617, 0.0, %v1593
        %v1634 = vsel %vm1618, 0.0, %v1595
        %v1635 = vsel %vm1619, 0.0, %v1597
        %v1636 = vsel %vm1620, 0.0, %v1599
        %v1637 = vsel %vm1621, 0.0, %v1601
        %v1638 = vsel %vm1622, 0.0, %v1603
        %v1639 = vsel %vm1623, 0.0, %v1605
        %v1640 = vsel %vm1624, 0.0, %v1607
        %v1641 = vsel %vm1625, 0.0, %v1609
        %v1642 = vlaneseq
        %v1643 = vand.u32 %v1642, 127
        %v1644 = vld [vmem:[%s201] sm:$0xff]
        %v1645 = vld [vmem:[%s201 + $0x8] sm:$0xff]
        %v1646 = vld [vmem:[%s201 + $0x10] sm:$0xff]
        %v1647 = vld [vmem:[%s201 + $0x18] sm:$0xff]
        %v1648 = vld [vmem:[%s201 + $0x20] sm:$0xff]
        %v1649 = vld [vmem:[%s201 + $0x28] sm:$0xff]
        %v1650 = vld [vmem:[%s201 + $0x30] sm:$0xff]
        %v1651 = vld [vmem:[%s201 + $0x38] sm:$0xff]
        %v1652 = vld [vmem:[%s201 + $0x40] sm:$0xff]
        %v1653 = vld [vmem:[%s201 + $0x48] sm:$0xff]
        %v1654 = vld [vmem:[%s201 + $0x50] sm:$0xff]
        %v1655 = vld [vmem:[%s201 + $0x58] sm:$0xff]
        %v1656 = vld [vmem:[%s201 + $0x60] sm:$0xff]
        %v1657 = vld [vmem:[%s201 + $0x68] sm:$0xff]
        %v1658 = vld [vmem:[%s201 + $0x70] sm:$0xff]
        %v1659 = vld [vmem:[%s201 + $0x78] sm:$0xff]
        %vm1660 = vcmp.eq.s32.totalorder %v1643, 3
        %1662 = vset.pattern.permute.xlu0 0
        %1663 = vperm.xlu0 %1662, %v1626
        %v1664 = vpop.permute.xlu0 %1663
        %1667 = vset.pattern.permute.xlu0 0
        %1668 = vperm.xlu0 %1667, %v1627
        %v1669 = vpop.permute.xlu0 %1668
        %1672 = vset.pattern.permute.xlu0 0
        %1673 = vperm.xlu0 %1672, %v1628
        %v1674 = vpop.permute.xlu0 %1673
        %1677 = vset.pattern.permute.xlu0 0
        %1678 = vperm.xlu0 %1677, %v1629
        %v1679 = vpop.permute.xlu0 %1678
        %1682 = vset.pattern.permute.xlu0 0
        %1683 = vperm.xlu0 %1682, %v1630
        %v1684 = vpop.permute.xlu0 %1683
        %1687 = vset.pattern.permute.xlu0 0
        %1688 = vperm.xlu0 %1687, %v1631
        %v1689 = vpop.permute.xlu0 %1688
        %1692 = vset.pattern.permute.xlu0 0
        %1693 = vperm.xlu0 %1692, %v1632
        %v1694 = vpop.permute.xlu0 %1693
        %1697 = vset.pattern.permute.xlu0 0
        %1698 = vperm.xlu0 %1697, %v1633
        %v1699 = vpop.permute.xlu0 %1698
        %1702 = vset.pattern.permute.xlu0 0
        %1703 = vperm.xlu0 %1702, %v1634
        %v1704 = vpop.permute.xlu0 %1703
        %1707 = vset.pattern.permute.xlu0 0
        %1708 = vperm.xlu0 %1707, %v1635
        %v1709 = vpop.permute.xlu0 %1708
        %1712 = vset.pattern.permute.xlu0 0
        %1713 = vperm.xlu0 %1712, %v1636
        %v1714 = vpop.permute.xlu0 %1713
        %1717 = vset.pattern.permute.xlu0 0
        %1718 = vperm.xlu0 %1717, %v1637
        %v1719 = vpop.permute.xlu0 %1718
        %1722 = vset.pattern.permute.xlu0 0
        %1723 = vperm.xlu0 %1722, %v1638
        %v1724 = vpop.permute.xlu0 %1723
        %1727 = vset.pattern.permute.xlu0 0
        %1728 = vperm.xlu0 %1727, %v1639
        %v1729 = vpop.permute.xlu0 %1728
        %1732 = vset.pattern.permute.xlu0 0
        %1733 = vperm.xlu0 %1732, %v1640
        %v1734 = vpop.permute.xlu0 %1733
        %1737 = vset.pattern.permute.xlu0 0
        %1738 = vperm.xlu0 %1737, %v1641
        %v1739 = vpop.permute.xlu0 %1738
        %v1741 = vsel %vm1660, %v1664, 0.0
        %v1742 = vsel %vm1660, %v1669, 0.0
        %v1743 = vsel %vm1660, %v1674, 0.0
        %v1744 = vsel %vm1660, %v1679, 0.0
        %v1745 = vsel %vm1660, %v1684, 0.0
        %v1746 = vsel %vm1660, %v1689, 0.0
        %v1747 = vsel %vm1660, %v1694, 0.0
        %v1748 = vsel %vm1660, %v1699, 0.0
        %v1749 = vsel %vm1660, %v1704, 0.0
        %v1750 = vsel %vm1660, %v1709, 0.0
        %v1751 = vsel %vm1660, %v1714, 0.0
        %v1752 = vsel %vm1660, %v1719, 0.0
        %v1753 = vsel %vm1660, %v1724, 0.0
        %v1754 = vsel %vm1660, %v1729, 0.0
        %v1755 = vsel %vm1660, %v1734, 0.0
        %v1756 = vsel %vm1660, %v1739, 0.0
        %v1757 = vadd.f32 %v1644, %v1741
        %v1758 = vadd.f32 %v1645, %v1742
        %v1759 = vadd.f32 %v1646, %v1743
        %v1760 = vadd.f32 %v1647, %v1744
        %v1761 = vadd.f32 %v1648, %v1745
        %v1762 = vadd.f32 %v1649, %v1746
        %v1763 = vadd.f32 %v1650, %v1747
        %v1764 = vadd.f32 %v1651, %v1748
        %v1765 = vadd.f32 %v1652, %v1749
        %v1766 = vadd.f32 %v1653, %v1750
        %v1767 = vadd.f32 %v1654, %v1751
        %v1768 = vadd.f32 %v1655, %v1752
        %v1769 = vadd.f32 %v1656, %v1753
        %v1770 = vadd.f32 %v1657, %v1754
        %v1771 = vadd.f32 %v1658, %v1755
        %v1772 = vadd.f32 %v1659, %v1756
        %1773 = vst.msk [vmem:[%s201] sm:$0xff] %vm1461, %v1757
        %1774 = vst.msk [vmem:[%s201 + $0x8] sm:$0xff] %vm1461, %v1758
        %1775 = vst.msk [vmem:[%s201 + $0x10] sm:$0xff] %vm1461, %v1759
        %1776 = vst.msk [vmem:[%s201 + $0x18] sm:$0xff] %vm1461, %v1760
        %1777 = vst.msk [vmem:[%s201 + $0x20] sm:$0xff] %vm1461, %v1761
        %1778 = vst.msk [vmem:[%s201 + $0x28] sm:$0xff] %vm1461, %v1762
        %1779 = vst.msk [vmem:[%s201 + $0x30] sm:$0xff] %vm1461, %v1763
        %1780 = vst.msk [vmem:[%s201 + $0x38] sm:$0xff] %vm1461, %v1764
        %1781 = vst.msk [vmem:[%s201 + $0x40] sm:$0xff] %vm1461, %v1765
        %1782 = vst.msk [vmem:[%s201 + $0x48] sm:$0xff] %vm1461, %v1766
        %1783 = vst.msk [vmem:[%s201 + $0x50] sm:$0xff] %vm1461, %v1767
        %1784 = vst.msk [vmem:[%s201 + $0x58] sm:$0xff] %vm1461, %v1768
        %1785 = vst.msk [vmem:[%s201 + $0x60] sm:$0xff] %vm1461, %v1769
        %1786 = vst.msk [vmem:[%s201 + $0x68] sm:$0xff] %vm1461, %v1770
        %1787 = vst.msk [vmem:[%s201 + $0x70] sm:$0xff] %vm1461, %v1771
        %1788 = vst.msk [vmem:[%s201 + $0x78] sm:$0xff] %vm1461, %v1772
      $region40: #{tpu_custom_call.1} parent=31 // pred_fallthru
        _
      %s1789 = smul.u32 16, %s18
      %p1790 = scmp.lt.s32.totalorder %s1789, 31
      %s1791 = scalar_select %p1790, %s1789, 31
      %s1792 = smul.addr %s1791, 8
      %s1793 = scalar_lea.vmem %s3, %s1792
      // Predicated region
      $region41: #{tpu_custom_call.1} parent=31 // pred_check
        %p1794 = pneg %p117
      $region42: #{tpu_custom_call.1} parent=31 // pred_check_branch
        %1796 = sbr.rel (%p1794) target = $region44
      $region43: #{tpu_custom_call.1} parent=31 // pred_region
        %s1797 = smul.u32 16, %s18
      $region44: #{tpu_custom_call.1} parent=31 // pred_fallthru
        _
    $region32: #{tpu_custom_call.1} parent=5 // pred_fallthru
      _
    %p1798 = scmp.le.s32.totalorder 2, %s9
    // Predicated region
    $region45: #{tpu_custom_call.1} parent=5 // pred_check
      %p1799 = pneg %p1798
    $region46: #{tpu_custom_call.1} parent=5 // pred_check_branch
      %1801 = sbr.rel (%p1799) target = $region48
    $region47: #{tpu_custom_call.1} parent=5 // pred_region
      %s1802 = ssub.s32 %s9, 2
      // Predicated region
      $region49: #{tpu_custom_call.1} parent=47 // pred_check
        %p1803 = pneg %p123
      $region50: #{tpu_custom_call.1} parent=47 // pred_check_branch
        %1805 = sbr.rel (%p1803) target = $region52
      $region51: #{tpu_custom_call.1} parent=47 // pred_region
        %s1806 = smul.u32 16, %s20
        %p1807 = scmp.lt.s32.totalorder %s1806, 31
        %s1808 = scalar_select %p1807, %s1806, 31
        %s1809 = smul.addr %s1808, 8
        %s1810 = scalar_lea.vmem %s3, %s1809
      $region52: #{tpu_custom_call.1} parent=47 // pred_fallthru
        _
    $region48: #{tpu_custom_call.1} parent=5 // pred_fallthru
      _
  $region6: #{tpu_custom_call.1} parent=0 // loop_footer
    %s13 = sadd.s32 1, %s9
  $region7: #{tpu_custom_call.1} parent=0 // loop_footer_branch
    %8 = sbr.rel target = $region3
  $region8: #{tpu_custom_call.1} parent=0 // loop_exit
    _

</llo_original>
